<compile_context>
chip_gen: v7x
topology: tpu7x:2x2x1
jax: 0.10.0
libtpu: 0.0.40
codegen_flags: <defaults>
</compile_context>

<pallas_src>
import functools

import jax
import jax.numpy as jnp
from jax.experimental import pallas as pl
from jax.experimental.pallas import tpu as pltpu

EPS = 1e-5        # PyTorch nn.LayerNorm default
NEG_INF = -1e30   # large finite negative for the causal mask


def _layer_norm(x, gamma, beta):
    mu = jnp.mean(x, axis=-1, keepdims=True)
    var = jnp.mean((x - mu) ** 2, axis=-1, keepdims=True)
    return (x - mu) * jax.lax.rsqrt(var + EPS) * gamma + beta


def transformer_layer_kernel(x_ref, mask_ref,
                             ln1_g_ref, ln1_b_ref,
                             w_in_ref, b_in_ref,
                             w_out_ref, b_out_ref,
                             ln2_g_ref, ln2_b_ref,
                             w1_ref, b1_ref,
                             w2_ref, b2_ref,
                             o_ref,
                             *, num_heads):
    x = x_ref[0]                                   # (S, D) f32
    S, D = x.shape
    dh = D // num_heads
    scale = 1.0 / float(dh) ** 0.5

    # ---- LN1 (f32) ----
    h = _layer_norm(x, ln1_g_ref[0], ln1_b_ref[0])

    # ---- QKV in-projection: bf16 MXU matmul, f32 accumulation ----
    qkv = jnp.dot(h.astype(jnp.bfloat16), w_in_ref[...],
                  preferred_element_type=jnp.float32) + b_in_ref[0]   # (S, 3D) f32

    q = qkv[:, :D] * scale            # fold 1/sqrt(dh) into q once
    k = qkv[:, D:2 * D]
    v = qkv[:, 2 * D:]

    # Head split onto a NEW leading axis: static lane slices + leading-dim
    # stack (no in-kernel (S,D)->(S,H,dh) reshape, no lane-axis concat).
    def split_heads(t):
        return jnp.stack(
            [t[:, hd * dh:(hd + 1) * dh] for hd in range(num_heads)], axis=0)

    qh = split_heads(q).astype(jnp.bfloat16)       # (H, S, dh)
    kh = split_heads(k).astype(jnp.bfloat16)       # (H, S, dh)
    vh = split_heads(v).astype(jnp.bfloat16)       # (H, S, dh)

    # ---- Batched causal attention over heads ----
    scores = jnp.einsum('hqd,hkd->hqk', qh, kh,
                        preferred_element_type=jnp.float32)            # (H,S,S) f32
    scores = scores + mask_ref[...]                # additive causal mask (0 / -1e30)

    m = jnp.max(scores, axis=-1, keepdims=True)    # f32 softmax statistics
    p = jnp.exp(scores - m)
    p = p * pl.reciprocal(jnp.sum(p, axis=-1, keepdims=True), approx=True)

    ctx = jnp.einsum('hqk,hkd->hqd', p.astype(jnp.bfloat16), vh,
                     preferred_element_type=jnp.float32)               # (H,S,dh) f32

    # ---- Out-projection without lane-axis concatenate ----
    # w_out is stored head-split as (H, dh, D); per-head partial products are
    # summed over the (cheap) leading head axis.
    per_head = jnp.einsum('hqd,hdo->hqo', ctx.astype(jnp.bfloat16), w_out_ref[...],
                          preferred_element_type=jnp.float32)          # (H,S,D) f32
    attn = jnp.sum(per_head, axis=0) + b_out_ref[0]

    x1 = attn + x                                   # residual (f32)

    # ---- LN2 + quick-GELU MLP + residual ----
    h2 = _layer_norm(x1, ln2_g_ref[0], ln2_b_ref[0])
    hidden = jnp.dot(h2.astype(jnp.bfloat16), w1_ref[...],
                     preferred_element_type=jnp.float32) + b1_ref[0]   # (S, 4D) f32
    hidden = hidden * jax.nn.sigmoid(1.702 * hidden)                   # quick-GELU, f32
    out = jnp.dot(hidden.astype(jnp.bfloat16), w2_ref[...],
                  preferred_element_type=jnp.float32) + b2_ref[0]
    o_ref[0] = out + x1


def _const_spec(shape):
    # Full-array block, resident in VMEM for every grid step.
    return pl.BlockSpec(shape, lambda b, _n=len(shape): (0,) * _n)


def transformer_layer(x, mask, p, num_heads):
    B, S, D = x.shape
    dh = D // num_heads
    in_specs = [
        pl.BlockSpec((1, S, D), lambda b: (b, 0, 0)),        # x: one batch slab / step
        _const_spec((S, S)),                                  # additive causal mask
        _const_spec((1, D)), _const_spec((1, D)),             # ln1 gamma/beta (f32)
        _const_spec((D, 3 * D)), _const_spec((1, 3 * D)),     # in_proj  (W bf16, b f32)
        _const_spec((num_heads, dh, D)), _const_spec((1, D)),  # out_proj (head-split W bf16)
        _const_spec((1, D)), _const_spec((1, D)),             # ln2 gamma/beta (f32)
        _const_spec((D, 4 * D)), _const_spec((1, 4 * D)),     # linear_1 (W bf16, b f32)
        _const_spec((4 * D, D)), _const_spec((1, D)),         # linear_2 (W bf16, b f32)
    ]
    # Note: bf16 weight storage keeps the whole-weight-resident scheme within
    # the default scoped VMEM even at real CLIP sizes (D=768 -> ~14 MB); for
    # larger D raise vmem_limit_bytes in CompilerParams or tile the MLP hidden
    # dim over an extra grid axis.  For B == 1 on v7x (2 TensorCores), add a
    # second "parallel" grid axis (e.g. split S) so one core does not idle.
    return pl.pallas_call(
        functools.partial(transformer_layer_kernel, num_heads=num_heads),
        out_shape=jax.ShapeDtypeStruct((B, S, D), x.dtype),
        grid=(B,),
        in_specs=in_specs,
        out_specs=pl.BlockSpec((1, S, D), lambda b: (b, 0, 0)),
        compiler_params=pltpu.CompilerParams(dimension_semantics=("parallel",)),
    )(x, mask,
      p["ln1_g"], p["ln1_b"], p["w_in"], p["b_in"], p["w_out"], p["b_out"],
      p["ln2_g"], p["ln2_b"], p["w1"], p["b1"], p["w2"], p["b2"])


def causal_bias(S):
    row = jnp.arange(S)[:, None]
    col = jnp.arange(S)[None, :]
    return jnp.where(col > row, NEG_INF, 0.0).astype(jnp.float32)


def init_layer_params(key, embedding_len, num_heads):
    D = embedding_len
    dh = D // num_heads
    k = jax.random.split(key, 4)
    w_out = 0.02 * jax.random.normal(k[1], (D, D), jnp.float32)
    return {
        "ln1_g": jnp.ones((1, D), jnp.float32),
        "ln1_b": jnp.zeros((1, D), jnp.float32),
        "w_in": (0.02 * jax.random.normal(k[0], (D, 3 * D), jnp.float32)).astype(jnp.bfloat16),
        "b_in": jnp.zeros((1, 3 * D), jnp.float32),
        # out_proj weight pre-split per head: (H, dh, D) so the kernel never
        # concatenates head outputs along the lane axis.
        "w_out": w_out.reshape(num_heads, dh, D).astype(jnp.bfloat16),
        "b_out": jnp.zeros((1, D), jnp.float32),
        "ln2_g": jnp.ones((1, D), jnp.float32),
        "ln2_b": jnp.zeros((1, D), jnp.float32),
        "w1": (0.02 * jax.random.normal(k[2], (D, 4 * D), jnp.float32)).astype(jnp.bfloat16),
        "b1": jnp.zeros((1, 4 * D), jnp.float32),
        "w2": (0.02 * jax.random.normal(k[3], (4 * D, D), jnp.float32)).astype(jnp.bfloat16),
        "b2": jnp.zeros((1, D), jnp.float32),
    }


if __name__ == "__main__":
    # Small shapes consistent with the module's forward: (batch, seq, embed).
    batch, seq, embed, num_heads = 2, 8, 32, 2

    key = jax.random.PRNGKey(0)
    pkey, xkey = jax.random.split(key)
    params = init_layer_params(pkey, embed, num_heads)
    x = jax.random.normal(xkey, (batch, seq, embed), jnp.float32)
    mask = causal_bias(seq)

    out = transformer_layer(x, mask, params, num_heads)
    jax.block_until_ready(out)
    assert out.shape == (batch, seq, embed)
    assert bool(jnp.all(jnp.isfinite(out)))
    print("KERNEL_OK")
</pallas_src>

<mosaic_0001>
module attributes {stable_mosaic.version = 11 : i64} {
  func.func @transformer_layer_kernel(%arg0: i32, %arg1: memref<1x8x32xf32, #tpu.memory_space<vmem>>, %arg2: memref<8x8xf32, #tpu.memory_space<vmem>>, %arg3: memref<1x32xf32, #tpu.memory_space<vmem>>, %arg4: memref<1x32xf32, #tpu.memory_space<vmem>>, %arg5: memref<32x96xbf16, #tpu.memory_space<vmem>>, %arg6: memref<1x96xf32, #tpu.memory_space<vmem>>, %arg7: memref<2x16x32xbf16, #tpu.memory_space<vmem>>, %arg8: memref<1x32xf32, #tpu.memory_space<vmem>>, %arg9: memref<1x32xf32, #tpu.memory_space<vmem>>, %arg10: memref<1x32xf32, #tpu.memory_space<vmem>>, %arg11: memref<32x128xbf16, #tpu.memory_space<vmem>>, %arg12: memref<1x128xf32, #tpu.memory_space<vmem>>, %arg13: memref<128x32xbf16, #tpu.memory_space<vmem>>, %arg14: memref<1x32xf32, #tpu.memory_space<vmem>>, %arg15: memref<1x8x32xf32, #tpu.memory_space<vmem>>) attributes {dimension_semantics = [#tpu.dimension_semantics<parallel>], iteration_bounds = array<i64: 2>, scalar_prefetch = 0 : i64, scratch_operands = 0 : i64, tpu.core_type = #tpu.core_type<tc>, window_params = [{transform_indices = @transform_0, window_bounds = array<i64: 1, 8, 32>}, {pipeline_mode = #tpu.pipeline_mode<synchronous>, transform_indices = @transform_1, window_bounds = array<i64: 8, 8>}, {pipeline_mode = #tpu.pipeline_mode<synchronous>, transform_indices = @transform_2, window_bounds = array<i64: 1, 32>}, {pipeline_mode = #tpu.pipeline_mode<synchronous>, transform_indices = @transform_3, window_bounds = array<i64: 1, 32>}, {pipeline_mode = #tpu.pipeline_mode<synchronous>, transform_indices = @transform_4, window_bounds = array<i64: 32, 96>}, {pipeline_mode = #tpu.pipeline_mode<synchronous>, transform_indices = @transform_5, window_bounds = array<i64: 1, 96>}, {pipeline_mode = #tpu.pipeline_mode<synchronous>, transform_indices = @transform_6, window_bounds = array<i64: 2, 16, 32>}, {pipeline_mode = #tpu.pipeline_mode<synchronous>, transform_indices = @transform_7, window_bounds = array<i64: 1, 32>}, {pipeline_mode = #tpu.pipeline_mode<synchronous>, transform_indices = @transform_8, window_bounds = array<i64: 1, 32>}, {pipeline_mode = #tpu.pipeline_mode<synchronous>, transform_indices = @transform_9, window_bounds = array<i64: 1, 32>}, {pipeline_mode = #tpu.pipeline_mode<synchronous>, transform_indices = @transform_10, window_bounds = array<i64: 32, 128>}, {pipeline_mode = #tpu.pipeline_mode<synchronous>, transform_indices = @transform_11, window_bounds = array<i64: 1, 128>}, {pipeline_mode = #tpu.pipeline_mode<synchronous>, transform_indices = @transform_12, window_bounds = array<i64: 128, 32>}, {pipeline_mode = #tpu.pipeline_mode<synchronous>, transform_indices = @transform_13, window_bounds = array<i64: 1, 32>}, {transform_indices = @transform_14, window_bounds = array<i64: 1, 8, 32>}]} {
    %c0 = arith.constant 0 : index
    %c0_0 = arith.constant 0 : index
    %c0_1 = arith.constant 0 : index
    %0 = vector.load %arg1[%c0, %c0_0, %c0_1] : memref<1x8x32xf32, #tpu.memory_space<vmem>>, vector<1x8x32xf32>
    %1 = vector.shape_cast %0 : vector<1x8x32xf32> to vector<8x32xf32>
    %c0_2 = arith.constant 0 : index
    %c0_3 = arith.constant 0 : index
    %2 = vector.load %arg3[%c0_2, %c0_3] : memref<1x32xf32, #tpu.memory_space<vmem>>, vector<1x32xf32>
    %3 = vector.shape_cast %2 : vector<1x32xf32> to vector<32xf32>
    %c0_4 = arith.constant 0 : index
    %c0_5 = arith.constant 0 : index
    %4 = vector.load %arg4[%c0_4, %c0_5] : memref<1x32xf32, #tpu.memory_space<vmem>>, vector<1x32xf32>
    %5 = vector.shape_cast %4 : vector<1x32xf32> to vector<32xf32>
    %cst = arith.constant dense<0.000000e+00> : vector<8xf32>
    %6 = vector.multi_reduction <add>, %1, %cst [1] : vector<8x32xf32> to vector<8xf32>
    %7 = vector.shape_cast %6 : vector<8xf32> to vector<8x1xf32>
    %cst_6 = arith.constant 3.200000e+01 : f32
    %8 = vector.broadcast %cst_6 : f32 to vector<8x1xf32>
    %9 = arith.divf %7, %8 : vector<8x1xf32>
    %10 = vector.broadcast %9 : vector<8x1xf32> to vector<8x32xf32>
    %11 = arith.subf %1, %10 : vector<8x32xf32>
    %12 = arith.mulf %11, %11 : vector<8x32xf32>
    %cst_7 = arith.constant dense<0.000000e+00> : vector<8xf32>
    %13 = vector.multi_reduction <add>, %12, %cst_7 [1] : vector<8x32xf32> to vector<8xf32>
    %14 = vector.shape_cast %13 : vector<8xf32> to vector<8x1xf32>
    %cst_8 = arith.constant 3.200000e+01 : f32
    %15 = vector.broadcast %cst_8 : f32 to vector<8x1xf32>
    %16 = arith.divf %14, %15 : vector<8x1xf32>
    %17 = vector.broadcast %9 : vector<8x1xf32> to vector<8x32xf32>
    %18 = arith.subf %1, %17 : vector<8x32xf32>
    %cst_9 = arith.constant 9.99999974E-6 : f32
    %19 = vector.broadcast %cst_9 : f32 to vector<8x1xf32>
    %20 = arith.addf %16, %19 : vector<8x1xf32>
    %21 = math.rsqrt %20 : vector<8x1xf32>
    %22 = vector.broadcast %21 : vector<8x1xf32> to vector<8x32xf32>
    %23 = arith.mulf %18, %22 : vector<8x32xf32>
    %24 = vector.shape_cast %3 : vector<32xf32> to vector<1x32xf32>
    %25 = vector.broadcast %24 : vector<1x32xf32> to vector<8x32xf32>
    %26 = arith.mulf %23, %25 : vector<8x32xf32>
    %27 = vector.shape_cast %5 : vector<32xf32> to vector<1x32xf32>
    %28 = vector.broadcast %27 : vector<1x32xf32> to vector<8x32xf32>
    %29 = arith.addf %26, %28 : vector<8x32xf32>
    %30 = arith.truncf %29 : vector<8x32xf32> to vector<8x32xbf16>
    %c0_10 = arith.constant 0 : index
    %c0_11 = arith.constant 0 : index
    %31 = vector.load %arg5[%c0_10, %c0_11] : memref<32x96xbf16, #tpu.memory_space<vmem>>, vector<32x96xbf16>
    %cst_12 = arith.constant dense<0.000000e+00> : vector<8x96xf32>
    %32 = tpu.matmul %30, %31, %cst_12 {dimension_numbers = #tpu.dot_dimension_numbers<[1], [0], [0], [1], [0, 0, 1, 1], [], []>} : vector<8x32xbf16>, vector<32x96xbf16>, vector<8x96xf32> -> vector<8x96xf32>
    %c0_13 = arith.constant 0 : index
    %c0_14 = arith.constant 0 : index
    %33 = vector.load %arg6[%c0_13, %c0_14] : memref<1x96xf32, #tpu.memory_space<vmem>>, vector<1x96xf32>
    %34 = vector.shape_cast %33 : vector<1x96xf32> to vector<96xf32>
    %35 = vector.shape_cast %34 : vector<96xf32> to vector<1x96xf32>
    %36 = vector.broadcast %35 : vector<1x96xf32> to vector<8x96xf32>
    %37 = arith.addf %32, %36 : vector<8x96xf32>
    %38 = vector.extract_strided_slice %37 {offsets = [0, 0], sizes = [8, 32], strides = [1, 1]} : vector<8x96xf32> to vector<8x32xf32>
    %cst_15 = arith.constant 2.500000e-01 : f32
    %39 = vector.broadcast %cst_15 : f32 to vector<8x32xf32>
    %40 = arith.mulf %38, %39 : vector<8x32xf32>
    %41 = vector.extract_strided_slice %37 {offsets = [0, 32], sizes = [8, 32], strides = [1, 1]} : vector<8x96xf32> to vector<8x32xf32>
    %42 = vector.extract_strided_slice %37 {offsets = [0, 64], sizes = [8, 32], strides = [1, 1]} : vector<8x96xf32> to vector<8x32xf32>
    %43 = vector.extract_strided_slice %40 {offsets = [0, 0], sizes = [8, 16], strides = [1, 1]} : vector<8x32xf32> to vector<8x16xf32>
    %44 = vector.extract_strided_slice %40 {offsets = [0, 16], sizes = [8, 16], strides = [1, 1]} : vector<8x32xf32> to vector<8x16xf32>
    %45 = vector.shape_cast %43 : vector<8x16xf32> to vector<1x8x16xf32>
    %46 = vector.shape_cast %44 : vector<8x16xf32> to vector<1x8x16xf32>
    %47 = tpu.concatenate %45, %46 in 0 : vector<1x8x16xf32>, vector<1x8x16xf32> -> vector<2x8x16xf32>
    %48 = arith.truncf %47 : vector<2x8x16xf32> to vector<2x8x16xbf16>
    %49 = vector.extract_strided_slice %41 {offsets = [0, 0], sizes = [8, 16], strides = [1, 1]} : vector<8x32xf32> to vector<8x16xf32>
    %50 = vector.extract_strided_slice %41 {offsets = [0, 16], sizes = [8, 16], strides = [1, 1]} : vector<8x32xf32> to vector<8x16xf32>
    %51 = vector.shape_cast %49 : vector<8x16xf32> to vector<1x8x16xf32>
    %52 = vector.shape_cast %50 : vector<8x16xf32> to vector<1x8x16xf32>
    %53 = tpu.concatenate %51, %52 in 0 : vector<1x8x16xf32>, vector<1x8x16xf32> -> vector<2x8x16xf32>
    %54 = arith.truncf %53 : vector<2x8x16xf32> to vector<2x8x16xbf16>
    %55 = vector.extract_strided_slice %42 {offsets = [0, 0], sizes = [8, 16], strides = [1, 1]} : vector<8x32xf32> to vector<8x16xf32>
    %56 = vector.extract_strided_slice %42 {offsets = [0, 16], sizes = [8, 16], strides = [1, 1]} : vector<8x32xf32> to vector<8x16xf32>
    %57 = vector.shape_cast %55 : vector<8x16xf32> to vector<1x8x16xf32>
    %58 = vector.shape_cast %56 : vector<8x16xf32> to vector<1x8x16xf32>
    %59 = tpu.concatenate %57, %58 in 0 : vector<1x8x16xf32>, vector<1x8x16xf32> -> vector<2x8x16xf32>
    %60 = arith.truncf %59 : vector<2x8x16xf32> to vector<2x8x16xbf16>
    "tpu.trace_start"() <{level = 10 : i32, message = "hqd,hkd->hqk"}> : () -> ()
    %cst_16 = arith.constant dense<0.000000e+00> : vector<2x8x8xf32>
    %61 = tpu.matmul %48, %54, %cst_16 {dimension_numbers = #tpu.dot_dimension_numbers<[2], [2], [1], [1], [0, 0, 0, 1, 1, 1], [0], [0]>} : vector<2x8x16xbf16>, vector<2x8x16xbf16>, vector<2x8x8xf32> -> vector<2x8x8xf32>
    "tpu.trace_stop"() : () -> ()
    %c0_17 = arith.constant 0 : index
    %c0_18 = arith.constant 0 : index
    %62 = vector.load %arg2[%c0_17, %c0_18] : memref<8x8xf32, #tpu.memory_space<vmem>>, vector<8x8xf32>
    %63 = vector.shape_cast %62 : vector<8x8xf32> to vector<1x8x8xf32>
    %64 = vector.broadcast %63 : vector<1x8x8xf32> to vector<2x8x8xf32>
    %65 = arith.addf %61, %64 : vector<2x8x8xf32>
    %cst_19 = arith.constant dense<0xFF800000> : vector<2x8xf32>
    %66 = vector.multi_reduction <maximumf>, %65, %cst_19 [2] : vector<2x8x8xf32> to vector<2x8xf32>
    %67 = vector.shape_cast %66 : vector<2x8xf32> to vector<2x8x1xf32>
    %68 = vector.broadcast %67 : vector<2x8x1xf32> to vector<2x8x8xf32>
    %69 = arith.subf %65, %68 : vector<2x8x8xf32>
    %70 = math.exp %69 : vector<2x8x8xf32>
    %cst_20 = arith.constant dense<0.000000e+00> : vector<2x8xf32>
    %71 = vector.multi_reduction <add>, %70, %cst_20 [2] : vector<2x8x8xf32> to vector<2x8xf32>
    %72 = vector.shape_cast %71 : vector<2x8xf32> to vector<2x8x1xf32>
    %73 = tpu.reciprocal %72 {approx = true} : vector<2x8x1xf32> -> vector<2x8x1xf32>
    %74 = vector.broadcast %73 : vector<2x8x1xf32> to vector<2x8x8xf32>
    %75 = arith.mulf %70, %74 : vector<2x8x8xf32>
    %76 = arith.truncf %75 : vector<2x8x8xf32> to vector<2x8x8xbf16>
    "tpu.trace_start"() <{level = 10 : i32, message = "hqk,hkd->hqd"}> : () -> ()
    %cst_21 = arith.constant dense<0.000000e+00> : vector<2x8x16xf32>
    %77 = tpu.matmul %76, %60, %cst_21 {dimension_numbers = #tpu.dot_dimension_numbers<[2], [1], [1], [2], [0, 0, 0, 1, 1, 2], [0], [0]>} : vector<2x8x8xbf16>, vector<2x8x16xbf16>, vector<2x8x16xf32> -> vector<2x8x16xf32>
    "tpu.trace_stop"() : () -> ()
    %78 = arith.truncf %77 : vector<2x8x16xf32> to vector<2x8x16xbf16>
    %c0_22 = arith.constant 0 : index
    %c0_23 = arith.constant 0 : index
    %c0_24 = arith.constant 0 : index
    %79 = vector.load %arg7[%c0_22, %c0_23, %c0_24] : memref<2x16x32xbf16, #tpu.memory_space<vmem>>, vector<2x16x32xbf16>
    "tpu.trace_start"() <{level = 10 : i32, message = "hqd,hdo->hqo"}> : () -> ()
    %cst_25 = arith.constant dense<0.000000e+00> : vector<2x8x32xf32>
    %80 = tpu.matmul %78, %79, %cst_25 {dimension_numbers = #tpu.dot_dimension_numbers<[2], [1], [1], [2], [0, 0, 0, 1, 1, 2], [0], [0]>} : vector<2x8x16xbf16>, vector<2x16x32xbf16>, vector<2x8x32xf32> -> vector<2x8x32xf32>
    "tpu.trace_stop"() : () -> ()
    %cst_26 = arith.constant dense<0.000000e+00> : vector<8x32xf32>
    %81 = vector.multi_reduction <add>, %80, %cst_26 [0] : vector<2x8x32xf32> to vector<8x32xf32>
    %c0_27 = arith.constant 0 : index
    %c0_28 = arith.constant 0 : index
    %82 = vector.load %arg8[%c0_27, %c0_28] : memref<1x32xf32, #tpu.memory_space<vmem>>, vector<1x32xf32>
    %83 = vector.shape_cast %82 : vector<1x32xf32> to vector<32xf32>
    %84 = vector.shape_cast %83 : vector<32xf32> to vector<1x32xf32>
    %85 = vector.broadcast %84 : vector<1x32xf32> to vector<8x32xf32>
    %86 = arith.addf %81, %85 : vector<8x32xf32>
    %87 = arith.addf %86, %1 : vector<8x32xf32>
    %c0_29 = arith.constant 0 : index
    %c0_30 = arith.constant 0 : index
    %88 = vector.load %arg9[%c0_29, %c0_30] : memref<1x32xf32, #tpu.memory_space<vmem>>, vector<1x32xf32>
    %89 = vector.shape_cast %88 : vector<1x32xf32> to vector<32xf32>
    %c0_31 = arith.constant 0 : index
    %c0_32 = arith.constant 0 : index
    %90 = vector.load %arg10[%c0_31, %c0_32] : memref<1x32xf32, #tpu.memory_space<vmem>>, vector<1x32xf32>
    %91 = vector.shape_cast %90 : vector<1x32xf32> to vector<32xf32>
    %cst_33 = arith.constant dense<0.000000e+00> : vector<8xf32>
    %92 = vector.multi_reduction <add>, %87, %cst_33 [1] : vector<8x32xf32> to vector<8xf32>
    %93 = vector.shape_cast %92 : vector<8xf32> to vector<8x1xf32>
    %cst_34 = arith.constant 3.200000e+01 : f32
    %94 = vector.broadcast %cst_34 : f32 to vector<8x1xf32>
    %95 = arith.divf %93, %94 : vector<8x1xf32>
    %96 = vector.broadcast %95 : vector<8x1xf32> to vector<8x32xf32>
    %97 = arith.subf %87, %96 : vector<8x32xf32>
    %98 = arith.mulf %97, %97 : vector<8x32xf32>
    %cst_35 = arith.constant dense<0.000000e+00> : vector<8xf32>
    %99 = vector.multi_reduction <add>, %98, %cst_35 [1] : vector<8x32xf32> to vector<8xf32>
    %100 = vector.shape_cast %99 : vector<8xf32> to vector<8x1xf32>
    %cst_36 = arith.constant 3.200000e+01 : f32
    %101 = vector.broadcast %cst_36 : f32 to vector<8x1xf32>
    %102 = arith.divf %100, %101 : vector<8x1xf32>
    %103 = vector.broadcast %95 : vector<8x1xf32> to vector<8x32xf32>
    %104 = arith.subf %87, %103 : vector<8x32xf32>
    %cst_37 = arith.constant 9.99999974E-6 : f32
    %105 = vector.broadcast %cst_37 : f32 to vector<8x1xf32>
    %106 = arith.addf %102, %105 : vector<8x1xf32>
    %107 = math.rsqrt %106 : vector<8x1xf32>
    %108 = vector.broadcast %107 : vector<8x1xf32> to vector<8x32xf32>
    %109 = arith.mulf %104, %108 : vector<8x32xf32>
    %110 = vector.shape_cast %89 : vector<32xf32> to vector<1x32xf32>
    %111 = vector.broadcast %110 : vector<1x32xf32> to vector<8x32xf32>
    %112 = arith.mulf %109, %111 : vector<8x32xf32>
    %113 = vector.shape_cast %91 : vector<32xf32> to vector<1x32xf32>
    %114 = vector.broadcast %113 : vector<1x32xf32> to vector<8x32xf32>
    %115 = arith.addf %112, %114 : vector<8x32xf32>
    %116 = arith.truncf %115 : vector<8x32xf32> to vector<8x32xbf16>
    %c0_38 = arith.constant 0 : index
    %c0_39 = arith.constant 0 : index
    %117 = vector.load %arg11[%c0_38, %c0_39] : memref<32x128xbf16, #tpu.memory_space<vmem>>, vector<32x128xbf16>
    %cst_40 = arith.constant dense<0.000000e+00> : vector<8x128xf32>
    %118 = tpu.matmul %116, %117, %cst_40 {dimension_numbers = #tpu.dot_dimension_numbers<[1], [0], [0], [1], [0, 0, 1, 1], [], []>} : vector<8x32xbf16>, vector<32x128xbf16>, vector<8x128xf32> -> vector<8x128xf32>
    %c0_41 = arith.constant 0 : index
    %c0_42 = arith.constant 0 : index
    %119 = vector.load %arg12[%c0_41, %c0_42] : memref<1x128xf32, #tpu.memory_space<vmem>>, vector<1x128xf32>
    %120 = vector.shape_cast %119 : vector<1x128xf32> to vector<128xf32>
    %121 = vector.shape_cast %120 : vector<128xf32> to vector<1x128xf32>
    %122 = vector.broadcast %121 : vector<1x128xf32> to vector<8x128xf32>
    %123 = arith.addf %118, %122 : vector<8x128xf32>
    %cst_43 = arith.constant 1.702000e+00 : f32
    %124 = vector.broadcast %cst_43 : f32 to vector<8x128xf32>
    %125 = arith.mulf %124, %123 : vector<8x128xf32>
    %126 = arith.negf %125 : vector<8x128xf32>
    %127 = math.exp %126 : vector<8x128xf32>
    %cst_44 = arith.constant 1.000000e+00 : f32
    %128 = vector.broadcast %cst_44 : f32 to vector<8x128xf32>
    %129 = arith.addf %128, %127 : vector<8x128xf32>
    %130 = arith.divf %128, %129 : vector<8x128xf32>
    %131 = arith.mulf %123, %130 : vector<8x128xf32>
    %132 = arith.truncf %131 : vector<8x128xf32> to vector<8x128xbf16>
    %c0_45 = arith.constant 0 : index
    %c0_46 = arith.constant 0 : index
    %133 = vector.load %arg13[%c0_45, %c0_46] : memref<128x32xbf16, #tpu.memory_space<vmem>>, vector<128x32xbf16>
    %cst_47 = arith.constant dense<0.000000e+00> : vector<8x32xf32>
    %134 = tpu.matmul %132, %133, %cst_47 {dimension_numbers = #tpu.dot_dimension_numbers<[1], [0], [0], [1], [0, 0, 1, 1], [], []>} : vector<8x128xbf16>, vector<128x32xbf16>, vector<8x32xf32> -> vector<8x32xf32>
    %c0_48 = arith.constant 0 : index
    %c0_49 = arith.constant 0 : index
    %135 = vector.load %arg14[%c0_48, %c0_49] : memref<1x32xf32, #tpu.memory_space<vmem>>, vector<1x32xf32>
    %136 = vector.shape_cast %135 : vector<1x32xf32> to vector<32xf32>
    %137 = vector.shape_cast %136 : vector<32xf32> to vector<1x32xf32>
    %138 = vector.broadcast %137 : vector<1x32xf32> to vector<8x32xf32>
    %139 = arith.addf %134, %138 : vector<8x32xf32>
    %140 = arith.addf %139, %87 : vector<8x32xf32>
    %c0_50 = arith.constant 0 : index
    %c0_51 = arith.constant 0 : index
    %c0_52 = arith.constant 0 : index
    %141 = vector.load %arg15[%c0_50, %c0_51, %c0_52] : memref<1x8x32xf32, #tpu.memory_space<vmem>>, vector<1x8x32xf32>
    %142 = vector.shape_cast %141 : vector<1x8x32xf32> to vector<8x32xf32>
    %143 = vector.shape_cast %140 : vector<8x32xf32> to vector<1x8x32xf32>
    tpu.vector_store %arg15[%c0_50, %c0_51, %c0_52], %143 {strides = array<i32>} : memref<1x8x32xf32, #tpu.memory_space<vmem>>, vector<1x8x32xf32>,
    return
  }
  func.func @transform_0(%arg0: i32) -> (i32, i32, i32) {
    %c0_i32 = arith.constant 0 : i32
    %c0_i32_0 = arith.constant 0 : i32
    %c0_i32_1 = arith.constant 0 : i32
    return %arg0, %c0_i32, %c0_i32_0 : i32, i32, i32
  }
  func.func @transform_1(%arg0: i32) -> (i32, i32) {
    %c0_i32 = arith.constant 0 : i32
    %c0_i32_0 = arith.constant 0 : i32
    %c0_i32_1 = arith.constant 0 : i32
    return %c0_i32, %c0_i32_0 : i32, i32
  }
  func.func @transform_2(%arg0: i32) -> (i32, i32) {
    %c0_i32 = arith.constant 0 : i32
    %c0_i32_0 = arith.constant 0 : i32
    %c0_i32_1 = arith.constant 0 : i32
    return %c0_i32, %c0_i32_0 : i32, i32
  }
  func.func @transform_3(%arg0: i32) -> (i32, i32) {
    %c0_i32 = arith.constant 0 : i32
    %c0_i32_0 = arith.constant 0 : i32
    %c0_i32_1 = arith.constant 0 : i32
    return %c0_i32, %c0_i32_0 : i32, i32
  }
  func.func @transform_4(%arg0: i32) -> (i32, i32) {
    %c0_i32 = arith.constant 0 : i32
    %c0_i32_0 = arith.constant 0 : i32
    %c0_i32_1 = arith.constant 0 : i32
    return %c0_i32, %c0_i32_0 : i32, i32
  }
  func.func @transform_5(%arg0: i32) -> (i32, i32) {
    %c0_i32 = arith.constant 0 : i32
    %c0_i32_0 = arith.constant 0 : i32
    %c0_i32_1 = arith.constant 0 : i32
    return %c0_i32, %c0_i32_0 : i32, i32
  }
  func.func @transform_6(%arg0: i32) -> (i32, i32, i32) {
    %c0_i32 = arith.constant 0 : i32
    %c0_i32_0 = arith.constant 0 : i32
    %c0_i32_1 = arith.constant 0 : i32
    %c0_i32_2 = arith.constant 0 : i32
    return %c0_i32, %c0_i32_0, %c0_i32_1 : i32, i32, i32
  }
  func.func @transform_7(%arg0: i32) -> (i32, i32) {
    %c0_i32 = arith.constant 0 : i32
    %c0_i32_0 = arith.constant 0 : i32
    %c0_i32_1 = arith.constant 0 : i32
    return %c0_i32, %c0_i32_0 : i32, i32
  }
  func.func @transform_8(%arg0: i32) -> (i32, i32) {
    %c0_i32 = arith.constant 0 : i32
    %c0_i32_0 = arith.constant 0 : i32
    %c0_i32_1 = arith.constant 0 : i32
    return %c0_i32, %c0_i32_0 : i32, i32
  }
  func.func @transform_9(%arg0: i32) -> (i32, i32) {
    %c0_i32 = arith.constant 0 : i32
    %c0_i32_0 = arith.constant 0 : i32
    %c0_i32_1 = arith.constant 0 : i32
    return %c0_i32, %c0_i32_0 : i32, i32
  }
  func.func @transform_10(%arg0: i32) -> (i32, i32) {
    %c0_i32 = arith.constant 0 : i32
    %c0_i32_0 = arith.constant 0 : i32
    %c0_i32_1 = arith.constant 0 : i32
    return %c0_i32, %c0_i32_0 : i32, i32
  }
  func.func @transform_11(%arg0: i32) -> (i32, i32) {
    %c0_i32 = arith.constant 0 : i32
    %c0_i32_0 = arith.constant 0 : i32
    %c0_i32_1 = arith.constant 0 : i32
    return %c0_i32, %c0_i32_0 : i32, i32
  }
  func.func @transform_12(%arg0: i32) -> (i32, i32) {
    %c0_i32 = arith.constant 0 : i32
    %c0_i32_0 = arith.constant 0 : i32
    %c0_i32_1 = arith.constant 0 : i32
    return %c0_i32, %c0_i32_0 : i32, i32
  }
  func.func @transform_13(%arg0: i32) -> (i32, i32) {
    %c0_i32 = arith.constant 0 : i32
    %c0_i32_0 = arith.constant 0 : i32
    %c0_i32_1 = arith.constant 0 : i32
    return %c0_i32, %c0_i32_0 : i32, i32
  }
  func.func @transform_14(%arg0: i32) -> (i32, i32, i32) {
    %c0_i32 = arith.constant 0 : i32
    %c0_i32_0 = arith.constant 0 : i32
    %c0_i32_1 = arith.constant 0 : i32
    return %arg0, %c0_i32, %c0_i32_0 : i32, i32, i32
  }
}

</mosaic_0001>

<llo_original>
// kernel: tpu_custom_call.1
$region0: #{tpu_custom_call.1}
  #allocation0 [shape = 'u32[]', space=smem, size = 0x4, offset = 0x4, fixed_abs, tag = 'smem constant byte address 0x4 - core index']
  #allocation1 [shape = 'u32[144,128]{1,0:T(1,128)}', space=vmem, size = 0x12000, scoped, tag = 'internal scratch']
  %s0 = inlined_call_operand.vmem [shape: f32[2,8,32], index: 0, kind: input, shape index: {}]
  %s1 = inlined_call_operand.vmem [shape: f32[8,8], index: 1, kind: input, shape index: {}]
  %s2 = inlined_call_operand.vmem [shape: f32[1,32], index: 2, kind: input, shape index: {}]
  %s3 = inlined_call_operand.vmem [shape: f32[1,32], index: 3, kind: input, shape index: {}]
  %s4 = inlined_call_operand.vmem [shape: bf16[32,96], index: 4, kind: input, shape index: {}]
  %s5 = inlined_call_operand.vmem [shape: f32[1,96], index: 5, kind: input, shape index: {}]
  %s6 = inlined_call_operand.vmem [shape: bf16[2,16,32], index: 6, kind: input, shape index: {}]
  %s7 = inlined_call_operand.vmem [shape: f32[1,32], index: 7, kind: input, shape index: {}]
  %s8 = inlined_call_operand.vmem [shape: f32[1,32], index: 8, kind: input, shape index: {}]
  %s9 = inlined_call_operand.vmem [shape: f32[1,32], index: 9, kind: input, shape index: {}]
  %s10 = inlined_call_operand.vmem [shape: bf16[32,128], index: 10, kind: input, shape index: {}]
  %s11 = inlined_call_operand.vmem [shape: f32[1,128], index: 11, kind: input, shape index: {}]
  %s12 = inlined_call_operand.vmem [shape: bf16[128,32], index: 12, kind: input, shape index: {}]
  %s13 = inlined_call_operand.vmem [shape: f32[1,32], index: 13, kind: input, shape index: {}]
  %s14 = inlined_call_operand.hbm [shape: f32[2,8,32], index: 14, kind: output, shape index: {}]
  %s15 = sld [smem:[#allocation0]]
  $region89: #{tpu_custom_call.1} parent=0
    _
  %s17 = ssub.s32 1, %s15
  %s18 = scalar_select 0, %s17, %s15
  $region1: #{tpu_custom_call.1} parent=0
    #allocation2 [shape = 'u8[8192]{0}', space=vmem, size = 0x2000, scoped, tag = 'output window, operand 0']
    #allocation3 [shape = 's32[2]{0}', space=sflag, size = 0x8, scoped, tag = 'scoped memory for tpu_custom_call.1']
    %19 = vsyncpa [#allocation3], 0
    %s20 = scalar_lea.sflag [#allocation3], 1
    %21 = vsyncpa %s20, 0
    loop: start=0, step=1, limit=4
    $region2: #{tpu_custom_call.1} parent=1 // loop_pre_header
      _
    $region3: #{tpu_custom_call.1} parent=1 // loop_header
      %s23 = sphi 0, %s27
      %p24 = scmp.ge.s32.totalorder %s23, 4
      %s33 = sphi 0, %s35
      %s36 = sphi 0, %s33
      %s37 = sphi 0, %s36
      %s53 = sphi 0, %s37
      %s57 = sphi 0, %s57
      %s59 = sphi 0, %s57
      %s60 = sphi 0, %s59
      %s74 = sphi 0, %s60
      %s78 = sphi 0, %s78
      %s80 = sphi 0, %s78
      %s81 = sphi 0, %s80
      %s95 = sphi 0, %s81
      %s99 = sphi 0, %s99
      %s101 = sphi 0, %s99
      %s102 = sphi 0, %s101
      %s116 = sphi 0, %s102
      %s120 = sphi 0, %s120
      %s122 = sphi 0, %s120
      %s123 = sphi 0, %s122
      %s137 = sphi 0, %s123
      %s141 = sphi 0, %s141
      %s143 = sphi 0, %s141
      %s144 = sphi 0, %s143
      %s158 = sphi 0, %s144
      %s162 = sphi 0, %s162
      %s164 = sphi 0, %s162
      %s165 = sphi 0, %s164
      %s179 = sphi 0, %s165
      %s183 = sphi 0, %s183
      %s185 = sphi 0, %s183
      %s186 = sphi 0, %s185
      %s200 = sphi 0, %s186
      %s204 = sphi 0, %s204
      %s206 = sphi 0, %s204
      %s207 = sphi 0, %s206
      %s221 = sphi 0, %s207
      %s225 = sphi 0, %s225
      %s227 = sphi 0, %s225
      %s228 = sphi 0, %s227
      %s242 = sphi 0, %s228
      %s246 = sphi 0, %s246
      %s248 = sphi 0, %s246
      %s249 = sphi 0, %s248
      %s263 = sphi 0, %s249
      %s267 = sphi 0, %s267
      %s269 = sphi 0, %s267
      %s270 = sphi 0, %s269
      %s284 = sphi 0, %s270
      %s288 = sphi 0, %s288
      %s290 = sphi 0, %s288
      %s291 = sphi 0, %s290
      %s305 = sphi 0, %s291
      %s309 = sphi 0, %s309
      %s311 = sphi 0, %s309
      %s312 = sphi 0, %s311
      %s326 = sphi 0, %s312
      %s332 = sphi 0, %s334
      %s335 = sphi 0, %s332
      %s336 = sphi 0, %s335
      %s352 = sphi 0, %s336
    $region4: #{tpu_custom_call.1} parent=1 // loop_header_branch
      %26 = sbr.rel (%p24) target = $region8
    $region5: #{tpu_custom_call.1} parent=1 // loop_body
      %s28 = ssub.s32 %s23, 1
      %s29 = ssub.s32 %s23, 2
      %s30 = sadd.s32 %s23, 1
      %s31 = ssub.s32 %s23, %s30
      %p32 = scmp.eq.s32.totalorder %s31, 0
      %s34 = sadd.s32 %s33, 1
      %s35 = scalar_select %p32, %s33, %s34
      %p38 = pneg %p32
      %p39 = scmp.eq.s32.totalorder %s23, 1
      %p40 = por %p38, %p39
      %p41 = scmp.ne.s32.totalorder %s33, %s36
      %p42 = scmp.eq.s32.totalorder %s23, 0
      %p43 = por %p41, %p42
      %p44 = scmp.ne.s32.totalorder %s33, %s36
      %p45 = scmp.eq.s32.totalorder %s28, 1
      %p46 = por %p44, %p45
      %p47 = scmp.ne.s32.totalorder %s36, %s37
      %p48 = scmp.eq.s32.totalorder %s28, 0
      %p49 = por %p47, %p48
      %p50 = scmp.ne.s32.totalorder %s36, %s37
      %p51 = scmp.eq.s32.totalorder %s29, 1
      %p52 = por %p50, %p51
      %p54 = scmp.ne.s32.totalorder %s37, %s53
      %p55 = scmp.eq.s32.totalorder %s29, 0
      %p56 = por %p54, %p55
      %s58 = sadd.s32 %s57, 1
      %p61 = scmp.eq.s32.totalorder %s23, 1
      %p62 = scmp.ne.s32.totalorder %s57, %s59
      %p63 = scmp.eq.s32.totalorder %s23, 0
      %p64 = por %p62, %p63
      %p65 = scmp.ne.s32.totalorder %s57, %s59
      %p66 = scmp.eq.s32.totalorder %s28, 1
      %p67 = por %p65, %p66
      %p68 = scmp.ne.s32.totalorder %s59, %s60
      %p69 = scmp.eq.s32.totalorder %s28, 0
      %p70 = por %p68, %p69
      %p71 = scmp.ne.s32.totalorder %s59, %s60
      %p72 = scmp.eq.s32.totalorder %s29, 1
      %p73 = por %p71, %p72
      %p75 = scmp.ne.s32.totalorder %s60, %s74
      %p76 = scmp.eq.s32.totalorder %s29, 0
      %p77 = por %p75, %p76
      %s79 = sadd.s32 %s78, 1
      %p82 = scmp.eq.s32.totalorder %s23, 1
      %p83 = scmp.ne.s32.totalorder %s78, %s80
      %p84 = scmp.eq.s32.totalorder %s23, 0
      %p85 = por %p83, %p84
      %p86 = scmp.ne.s32.totalorder %s78, %s80
      %p87 = scmp.eq.s32.totalorder %s28, 1
      %p88 = por %p86, %p87
      %p89 = scmp.ne.s32.totalorder %s80, %s81
      %p90 = scmp.eq.s32.totalorder %s28, 0
      %p91 = por %p89, %p90
      %p92 = scmp.ne.s32.totalorder %s80, %s81
      %p93 = scmp.eq.s32.totalorder %s29, 1
      %p94 = por %p92, %p93
      %p96 = scmp.ne.s32.totalorder %s81, %s95
      %p97 = scmp.eq.s32.totalorder %s29, 0
      %p98 = por %p96, %p97
      %s100 = sadd.s32 %s99, 1
      %p103 = scmp.eq.s32.totalorder %s23, 1
      %p104 = scmp.ne.s32.totalorder %s99, %s101
      %p105 = scmp.eq.s32.totalorder %s23, 0
      %p106 = por %p104, %p105
      %p107 = scmp.ne.s32.totalorder %s99, %s101
      %p108 = scmp.eq.s32.totalorder %s28, 1
      %p109 = por %p107, %p108
      %p110 = scmp.ne.s32.totalorder %s101, %s102
      %p111 = scmp.eq.s32.totalorder %s28, 0
      %p112 = por %p110, %p111
      %p113 = scmp.ne.s32.totalorder %s101, %s102
      %p114 = scmp.eq.s32.totalorder %s29, 1
      %p115 = por %p113, %p114
      %p117 = scmp.ne.s32.totalorder %s102, %s116
      %p118 = scmp.eq.s32.totalorder %s29, 0
      %p119 = por %p117, %p118
      %s121 = sadd.s32 %s120, 1
      %p124 = scmp.eq.s32.totalorder %s23, 1
      %p125 = scmp.ne.s32.totalorder %s120, %s122
      %p126 = scmp.eq.s32.totalorder %s23, 0
      %p127 = por %p125, %p126
      %p128 = scmp.ne.s32.totalorder %s120, %s122
      %p129 = scmp.eq.s32.totalorder %s28, 1
      %p130 = por %p128, %p129
      %p131 = scmp.ne.s32.totalorder %s122, %s123
      %p132 = scmp.eq.s32.totalorder %s28, 0
      %p133 = por %p131, %p132
      %p134 = scmp.ne.s32.totalorder %s122, %s123
      %p135 = scmp.eq.s32.totalorder %s29, 1
      %p136 = por %p134, %p135
      %p138 = scmp.ne.s32.totalorder %s123, %s137
      %p139 = scmp.eq.s32.totalorder %s29, 0
      %p140 = por %p138, %p139
      %s142 = sadd.s32 %s141, 1
      %p145 = scmp.eq.s32.totalorder %s23, 1
      %p146 = scmp.ne.s32.totalorder %s141, %s143
      %p147 = scmp.eq.s32.totalorder %s23, 0
      %p148 = por %p146, %p147
      %p149 = scmp.ne.s32.totalorder %s141, %s143
      %p150 = scmp.eq.s32.totalorder %s28, 1
      %p151 = por %p149, %p150
      %p152 = scmp.ne.s32.totalorder %s143, %s144
      %p153 = scmp.eq.s32.totalorder %s28, 0
      %p154 = por %p152, %p153
      %p155 = scmp.ne.s32.totalorder %s143, %s144
      %p156 = scmp.eq.s32.totalorder %s29, 1
      %p157 = por %p155, %p156
      %p159 = scmp.ne.s32.totalorder %s144, %s158
      %p160 = scmp.eq.s32.totalorder %s29, 0
      %p161 = por %p159, %p160
      %s163 = sadd.s32 %s162, 1
      %p166 = scmp.eq.s32.totalorder %s23, 1
      %p167 = scmp.ne.s32.totalorder %s162, %s164
      %p168 = scmp.eq.s32.totalorder %s23, 0
      %p169 = por %p167, %p168
      %p170 = scmp.ne.s32.totalorder %s162, %s164
      %p171 = scmp.eq.s32.totalorder %s28, 1
      %p172 = por %p170, %p171
      %p173 = scmp.ne.s32.totalorder %s164, %s165
      %p174 = scmp.eq.s32.totalorder %s28, 0
      %p175 = por %p173, %p174
      %p176 = scmp.ne.s32.totalorder %s164, %s165
      %p177 = scmp.eq.s32.totalorder %s29, 1
      %p178 = por %p176, %p177
      %p180 = scmp.ne.s32.totalorder %s165, %s179
      %p181 = scmp.eq.s32.totalorder %s29, 0
      %p182 = por %p180, %p181
      %s184 = sadd.s32 %s183, 1
      %p187 = scmp.eq.s32.totalorder %s23, 1
      %p188 = scmp.ne.s32.totalorder %s183, %s185
      %p189 = scmp.eq.s32.totalorder %s23, 0
      %p190 = por %p188, %p189
      %p191 = scmp.ne.s32.totalorder %s183, %s185
      %p192 = scmp.eq.s32.totalorder %s28, 1
      %p193 = por %p191, %p192
      %p194 = scmp.ne.s32.totalorder %s185, %s186
      %p195 = scmp.eq.s32.totalorder %s28, 0
      %p196 = por %p194, %p195
      %p197 = scmp.ne.s32.totalorder %s185, %s186
      %p198 = scmp.eq.s32.totalorder %s29, 1
      %p199 = por %p197, %p198
      %p201 = scmp.ne.s32.totalorder %s186, %s200
      %p202 = scmp.eq.s32.totalorder %s29, 0
      %p203 = por %p201, %p202
      %s205 = sadd.s32 %s204, 1
      %p208 = scmp.eq.s32.totalorder %s23, 1
      %p209 = scmp.ne.s32.totalorder %s204, %s206
      %p210 = scmp.eq.s32.totalorder %s23, 0
      %p211 = por %p209, %p210
      %p212 = scmp.ne.s32.totalorder %s204, %s206
      %p213 = scmp.eq.s32.totalorder %s28, 1
      %p214 = por %p212, %p213
      %p215 = scmp.ne.s32.totalorder %s206, %s207
      %p216 = scmp.eq.s32.totalorder %s28, 0
      %p217 = por %p215, %p216
      %p218 = scmp.ne.s32.totalorder %s206, %s207
      %p219 = scmp.eq.s32.totalorder %s29, 1
      %p220 = por %p218, %p219
      %p222 = scmp.ne.s32.totalorder %s207, %s221
      %p223 = scmp.eq.s32.totalorder %s29, 0
      %p224 = por %p222, %p223
      %s226 = sadd.s32 %s225, 1
      %p229 = scmp.eq.s32.totalorder %s23, 1
      %p230 = scmp.ne.s32.totalorder %s225, %s227
      %p231 = scmp.eq.s32.totalorder %s23, 0
      %p232 = por %p230, %p231
      %p233 = scmp.ne.s32.totalorder %s225, %s227
      %p234 = scmp.eq.s32.totalorder %s28, 1
      %p235 = por %p233, %p234
      %p236 = scmp.ne.s32.totalorder %s227, %s228
      %p237 = scmp.eq.s32.totalorder %s28, 0
      %p238 = por %p236, %p237
      %p239 = scmp.ne.s32.totalorder %s227, %s228
      %p240 = scmp.eq.s32.totalorder %s29, 1
      %p241 = por %p239, %p240
      %p243 = scmp.ne.s32.totalorder %s228, %s242
      %p244 = scmp.eq.s32.totalorder %s29, 0
      %p245 = por %p243, %p244
      %s247 = sadd.s32 %s246, 1
      %p250 = scmp.eq.s32.totalorder %s23, 1
      %p251 = scmp.ne.s32.totalorder %s246, %s248
      %p252 = scmp.eq.s32.totalorder %s23, 0
      %p253 = por %p251, %p252
      %p254 = scmp.ne.s32.totalorder %s246, %s248
      %p255 = scmp.eq.s32.totalorder %s28, 1
      %p256 = por %p254, %p255
      %p257 = scmp.ne.s32.totalorder %s248, %s249
      %p258 = scmp.eq.s32.totalorder %s28, 0
      %p259 = por %p257, %p258
      %p260 = scmp.ne.s32.totalorder %s248, %s249
      %p261 = scmp.eq.s32.totalorder %s29, 1
      %p262 = por %p260, %p261
      %p264 = scmp.ne.s32.totalorder %s249, %s263
      %p265 = scmp.eq.s32.totalorder %s29, 0
      %p266 = por %p264, %p265
      %s268 = sadd.s32 %s267, 1
      %p271 = scmp.eq.s32.totalorder %s23, 1
      %p272 = scmp.ne.s32.totalorder %s267, %s269
      %p273 = scmp.eq.s32.totalorder %s23, 0
      %p274 = por %p272, %p273
      %p275 = scmp.ne.s32.totalorder %s267, %s269
      %p276 = scmp.eq.s32.totalorder %s28, 1
      %p277 = por %p275, %p276
      %p278 = scmp.ne.s32.totalorder %s269, %s270
      %p279 = scmp.eq.s32.totalorder %s28, 0
      %p280 = por %p278, %p279
      %p281 = scmp.ne.s32.totalorder %s269, %s270
      %p282 = scmp.eq.s32.totalorder %s29, 1
      %p283 = por %p281, %p282
      %p285 = scmp.ne.s32.totalorder %s270, %s284
      %p286 = scmp.eq.s32.totalorder %s29, 0
      %p287 = por %p285, %p286
      %s289 = sadd.s32 %s288, 1
      %p292 = scmp.eq.s32.totalorder %s23, 1
      %p293 = scmp.ne.s32.totalorder %s288, %s290
      %p294 = scmp.eq.s32.totalorder %s23, 0
      %p295 = por %p293, %p294
      %p296 = scmp.ne.s32.totalorder %s288, %s290
      %p297 = scmp.eq.s32.totalorder %s28, 1
      %p298 = por %p296, %p297
      %p299 = scmp.ne.s32.totalorder %s290, %s291
      %p300 = scmp.eq.s32.totalorder %s28, 0
      %p301 = por %p299, %p300
      %p302 = scmp.ne.s32.totalorder %s290, %s291
      %p303 = scmp.eq.s32.totalorder %s29, 1
      %p304 = por %p302, %p303
      %p306 = scmp.ne.s32.totalorder %s291, %s305
      %p307 = scmp.eq.s32.totalorder %s29, 0
      %p308 = por %p306, %p307
      %s310 = sadd.s32 %s309, 1
      %p313 = scmp.eq.s32.totalorder %s23, 1
      %p314 = scmp.ne.s32.totalorder %s309, %s311
      %p315 = scmp.eq.s32.totalorder %s23, 0
      %p316 = por %p314, %p315
      %p317 = scmp.ne.s32.totalorder %s309, %s311
      %p318 = scmp.eq.s32.totalorder %s28, 1
      %p319 = por %p317, %p318
      %p320 = scmp.ne.s32.totalorder %s311, %s312
      %p321 = scmp.eq.s32.totalorder %s28, 0
      %p322 = por %p320, %p321
      %p323 = scmp.ne.s32.totalorder %s311, %s312
      %p324 = scmp.eq.s32.totalorder %s29, 1
      %p325 = por %p323, %p324
      %p327 = scmp.ne.s32.totalorder %s312, %s326
      %p328 = scmp.eq.s32.totalorder %s29, 0
      %p329 = por %p327, %p328
      %s330 = ssub.s32 %s23, %s30
      %p331 = scmp.eq.s32.totalorder %s330, 0
      %s333 = sadd.s32 %s332, 1
      %s334 = scalar_select %p331, %s332, %s333
      %p337 = pneg %p331
      %p338 = scmp.eq.s32.totalorder %s23, 1
      %p339 = por %p337, %p338
      %p340 = scmp.ne.s32.totalorder %s332, %s335
      %p341 = scmp.eq.s32.totalorder %s23, 0
      %p342 = por %p340, %p341
      %p343 = scmp.ne.s32.totalorder %s332, %s335
      %p344 = scmp.eq.s32.totalorder %s28, 1
      %p345 = por %p343, %p344
      %p346 = scmp.ne.s32.totalorder %s335, %s336
      %p347 = scmp.eq.s32.totalorder %s28, 0
      %p348 = por %p346, %p347
      %p349 = scmp.ne.s32.totalorder %s335, %s336
      %p350 = scmp.eq.s32.totalorder %s29, 1
      %p351 = por %p349, %p350
      %p353 = scmp.ne.s32.totalorder %s336, %s352
      %p354 = scmp.eq.s32.totalorder %s29, 0
      %p355 = por %p353, %p354
      %p356 = scmp.le.s32.totalorder 1, %s23
      %p357 = scmp.lt.s32.totalorder %s23, 3
      %p358 = pnand %p356, %p357
      %p359 = pneg %p358
      // Predicated region
      $region9: #{tpu_custom_call.1} parent=5 // pred_check
        _
      $region10: #{tpu_custom_call.1} parent=5 // pred_check_branch
        %361 = sbr.rel (%p358) target = $region12
      $region11: #{tpu_custom_call.1} parent=5 // pred_region
        %s362 = ssub.s32 %s23, 1
        // Predicated region
        $region13: #{tpu_custom_call.1} parent=11 // pred_check
          %p363 = pneg %p70
        $region14: #{tpu_custom_call.1} parent=11 // pred_check_branch
          %365 = sbr.rel (%p363) target = $region16
        $region15: #{tpu_custom_call.1} parent=11 // pred_region
          _
        $region16: #{tpu_custom_call.1} parent=11 // pred_fallthru
          _
        // Predicated region
        $region17: #{tpu_custom_call.1} parent=11 // pred_check
          %p366 = pneg %p91
        $region18: #{tpu_custom_call.1} parent=11 // pred_check_branch
          %368 = sbr.rel (%p366) target = $region20
        $region19: #{tpu_custom_call.1} parent=11 // pred_region
          _
        $region20: #{tpu_custom_call.1} parent=11 // pred_fallthru
          _
        // Predicated region
        $region21: #{tpu_custom_call.1} parent=11 // pred_check
          %p369 = pneg %p112
        $region22: #{tpu_custom_call.1} parent=11 // pred_check_branch
          %371 = sbr.rel (%p369) target = $region24
        $region23: #{tpu_custom_call.1} parent=11 // pred_region
          _
        $region24: #{tpu_custom_call.1} parent=11 // pred_fallthru
          _
        // Predicated region
        $region25: #{tpu_custom_call.1} parent=11 // pred_check
          %p372 = pneg %p133
        $region26: #{tpu_custom_call.1} parent=11 // pred_check_branch
          %374 = sbr.rel (%p372) target = $region28
        $region27: #{tpu_custom_call.1} parent=11 // pred_region
          _
        $region28: #{tpu_custom_call.1} parent=11 // pred_fallthru
          _
        // Predicated region
        $region29: #{tpu_custom_call.1} parent=11 // pred_check
          %p375 = pneg %p154
        $region30: #{tpu_custom_call.1} parent=11 // pred_check_branch
          %377 = sbr.rel (%p375) target = $region32
        $region31: #{tpu_custom_call.1} parent=11 // pred_region
          _
        $region32: #{tpu_custom_call.1} parent=11 // pred_fallthru
          _
        // Predicated region
        $region33: #{tpu_custom_call.1} parent=11 // pred_check
          %p378 = pneg %p175
        $region34: #{tpu_custom_call.1} parent=11 // pred_check_branch
          %380 = sbr.rel (%p378) target = $region36
        $region35: #{tpu_custom_call.1} parent=11 // pred_region
          _
        $region36: #{tpu_custom_call.1} parent=11 // pred_fallthru
          _
        // Predicated region
        $region37: #{tpu_custom_call.1} parent=11 // pred_check
          %p381 = pneg %p196
        $region38: #{tpu_custom_call.1} parent=11 // pred_check_branch
          %383 = sbr.rel (%p381) target = $region40
        $region39: #{tpu_custom_call.1} parent=11 // pred_region
          _
        $region40: #{tpu_custom_call.1} parent=11 // pred_fallthru
          _
        // Predicated region
        $region41: #{tpu_custom_call.1} parent=11 // pred_check
          %p384 = pneg %p217
        $region42: #{tpu_custom_call.1} parent=11 // pred_check_branch
          %386 = sbr.rel (%p384) target = $region44
        $region43: #{tpu_custom_call.1} parent=11 // pred_region
          _
        $region44: #{tpu_custom_call.1} parent=11 // pred_fallthru
          _
        // Predicated region
        $region45: #{tpu_custom_call.1} parent=11 // pred_check
          %p387 = pneg %p238
        $region46: #{tpu_custom_call.1} parent=11 // pred_check_branch
          %389 = sbr.rel (%p387) target = $region48
        $region47: #{tpu_custom_call.1} parent=11 // pred_region
          _
        $region48: #{tpu_custom_call.1} parent=11 // pred_fallthru
          _
        // Predicated region
        $region49: #{tpu_custom_call.1} parent=11 // pred_check
          %p390 = pneg %p259
        $region50: #{tpu_custom_call.1} parent=11 // pred_check_branch
          %392 = sbr.rel (%p390) target = $region52
        $region51: #{tpu_custom_call.1} parent=11 // pred_region
          _
        $region52: #{tpu_custom_call.1} parent=11 // pred_fallthru
          _
        // Predicated region
        $region53: #{tpu_custom_call.1} parent=11 // pred_check
          %p393 = pneg %p280
        $region54: #{tpu_custom_call.1} parent=11 // pred_check_branch
          %395 = sbr.rel (%p393) target = $region56
        $region55: #{tpu_custom_call.1} parent=11 // pred_region
          _
        $region56: #{tpu_custom_call.1} parent=11 // pred_fallthru
          _
        // Predicated region
        $region57: #{tpu_custom_call.1} parent=11 // pred_check
          %p396 = pneg %p301
        $region58: #{tpu_custom_call.1} parent=11 // pred_check_branch
          %398 = sbr.rel (%p396) target = $region60
        $region59: #{tpu_custom_call.1} parent=11 // pred_region
          _
        $region60: #{tpu_custom_call.1} parent=11 // pred_fallthru
          _
        // Predicated region
        $region61: #{tpu_custom_call.1} parent=11 // pred_check
          %p399 = pneg %p322
        $region62: #{tpu_custom_call.1} parent=11 // pred_check_branch
          %401 = sbr.rel (%p399) target = $region64
        $region63: #{tpu_custom_call.1} parent=11 // pred_region
          _
        $region64: #{tpu_custom_call.1} parent=11 // pred_fallthru
          _
      $region12: #{tpu_custom_call.1} parent=5 // pred_fallthru
        _
      %p402 = scmp.lt.s32.totalorder %s23, 2
      // Predicated region
      $region65: #{tpu_custom_call.1} parent=5 // pred_check
        %p403 = pneg %p402
      $region66: #{tpu_custom_call.1} parent=5 // pred_check_branch
        %405 = sbr.rel (%p403) target = $region68
      $region67: #{tpu_custom_call.1} parent=5 // pred_region
        // Predicated region
        $region69: #{tpu_custom_call.1} parent=67 // pred_check
          %p406 = pneg %p43
        $region70: #{tpu_custom_call.1} parent=67 // pred_check_branch
          %408 = sbr.rel (%p406) target = $region72
        $region71: #{tpu_custom_call.1} parent=67 // pred_region
          %p409 = scmp.lt.s32.totalorder %s23, 1
          %s410 = scalar_select %p409, %s23, 1
          %s411 = smul.addr %s410, 8
          %s412 = scalar_lea.vmem %s0, %s411
        $region72: #{tpu_custom_call.1} parent=67 // pred_fallthru
          _
      $region68: #{tpu_custom_call.1} parent=5 // pred_fallthru
        _
      %p413 = scmp.le.s32.totalorder 1, %s23
      %p414 = scmp.lt.s32.totalorder %s23, 3
      %p415 = pnand %p413, %p414
      %p416 = pneg %p415
      // Predicated region
      $region73: #{tpu_custom_call.1} parent=5 // pred_check
        _
      $region74: #{tpu_custom_call.1} parent=5 // pred_check_branch
        %418 = sbr.rel (%p415) target = $region76
      $region75: #{tpu_custom_call.1} parent=5 // pred_region
        %s419 = ssub.s32 %s23, 1
        %p420 = scmp.lt.s32.totalorder %s28, 1
        %s421 = scalar_select %p420, %s28, 1
        %s422 = smul.addr %s421, 8
        %s423 = scalar_lea.vmem %s0, %s422
        %p424 = pneg %p49
        %p425 = pneg %p46
        %p426 = pneg %p70
        %p427 = pneg %p67
        %p428 = pneg %p91
        %p429 = pneg %p88
        %p430 = pneg %p112
        %p431 = pneg %p109
        %p432 = pneg %p133
        %p433 = pneg %p130
        %p434 = pneg %p154
        %p435 = pneg %p151
        %p436 = pneg %p175
        %p437 = pneg %p172
        %p438 = pneg %p196
        %p439 = pneg %p193
        %p440 = pneg %p217
        %p441 = pneg %p214
        %p442 = pneg %p238
        %p443 = pneg %p235
        %p444 = pneg %p259
        %p445 = pneg %p256
        %p446 = pneg %p280
        %p447 = pneg %p277
        %p448 = pneg %p301
        %p449 = pneg %p298
        %p450 = pneg %p322
        %p451 = pneg %p319
        %p452 = pneg %p348
        %p453 = pneg %p345
        %s454 = sand.u32 %s335, 1
        %s455 = scalar_lea.sflag [#allocation3], %s454
        %s456 = sand.u32 %s335, 1
        %s457 = smul.addr %s456, 8
        %s458 = scalar_lea.vmem [#allocation2], %s457
        %p459 = scmp.lt.s32.totalorder %s28, 1
        %s460 = scalar_select %p459, %s28, 1
        %s461 = smul.addr %s460, 8
        %s462 = scalar_lea.vmem %s0, %s461
        %v464 = vld [vmem:[%s462] sm:$0xff]
        %v465 = vld [vmem:[%s2] sm:$0x1]
        %v466 = vld [vmem:[%s3] sm:$0x1]
        %vm467 = vcmask 261120
        %v468 = vsel %vm467, %v464, 0.0
        %469 = vadd.xlane.f32.xlu0 %v468
        %v470 = vpop.xlane.xlu0 %469
        %v471 = vrcp.pop 32.0
        %v472 = vmul.f32 %v470, %v471
        %v473 = vsub.f32 %v464, %v472
        %v474 = vmul.f32 %v473, %v473
        %v475 = vsel %vm467, %v474, 0.0
        %476 = vadd.xlane.f32.xlu0 %v475
        %v477 = vpop.xlane.xlu0 %476
        %v478 = vmul.f32 %v477, %v471
        %v479 = vadd.f32 %v478, 1e-05
        %v480 = vrsqrt.pop %v479
        %v481 = vmul.f32 %v473, %v480
        %v483 = vlaneseq
        %v484 = vshrl.u32 %v483, 7
        %v485 = vsub.s32 0, %v484
        %v486 = vrot.slane %v465, %v485
        %v488 = vmul.f32 %v481, %v486
        %v490 = vlaneseq
        %v491 = vshrl.u32 %v490, 7
        %v492 = vsub.s32 0, %v491
        %v493 = vrot.slane %v466, %v492
        %v495 = vadd.f32 %v488, %v493
        %v496 = vpack.c.bf16 %v495, %v495
        %v497 = vld [vmem:[%s4] sm:$0xf]
        %v498 = vld [vmem:[%s4 + $0x4] sm:$0xf]
        %v499 = vld [vmem:[%s4 + $0x8] sm:$0xf]
        %v500 = vld [vmem:[%s4 + $0xc] sm:$0xf]
        %v501 = vld [vmem:[%s5] sm:$0x1]
        %v503 = vlaneseq
        %v504 = vshrl.u32 %v503, 7
        %v505 = vsub.s32 0, %v504
        %v506 = vrot.slane %v501, %v505
        %v512 = vunpack.c.l.b16 %v497
        %v513 = vunpack.c.l.b16 %v498
        %v514 = vunpack.c.l.b16 %v499
        %v515 = vunpack.c.l.b16 %v500
        %v516 = vpack.c.b16 %v513, %v512
        %v517 = vpack.c.b16 %v515, %v514
        %v521 = vsel %vm467, %v496, 0
        %523 = vmatprep.subr.bf16.mxu0 0
        %524 = vmatpush1.bf16.msra.mxu0 %v516
        %525 = vmatprep.subr.bf16.mxu0 0
        %526 = vmatpush1.bf16.msra.mxu0 %v517
        %527 = vmatprep.subr.bf16.mxu0 0
        %528 = vmatpush1.bf16.msra.mxu0 0
        %529 = vmatprep.subr.bf16.mxu0 0
        %530 = vmatpush1.bf16.msra.mxu0 0
        %531 = vmatprep.subr.bf16.mxu0 0
        %532 = vmatpush1.bf16.msra.mxu0 0
        %533 = vmatprep.subr.bf16.mxu0 0
        %534 = vmatpush1.bf16.msra.mxu0 0
        %535 = vmatprep.subr.bf16.mxu0 0
        %536 = vmatpush1.bf16.msra.mxu0 0
        %537 = vmatprep.subr.bf16.mxu0 0
        %538 = vmatpush1.bf16.msra.mxu0 0
        %539 = vmatprep.subr.bf16.mxu0 0
        %540 = vmatpush1.bf16.msra.mxu0 0
        %541 = vmatprep.subr.bf16.mxu0 0
        %542 = vmatpush1.bf16.msra.mxu0 0
        %543 = vmatprep.subr.bf16.mxu0 0
        %544 = vmatpush1.bf16.msra.mxu0 0
        %545 = vmatprep.subr.bf16.mxu0 0
        %546 = vmatpush1.bf16.msra.mxu0 0
        %547 = vmatprep.subr.bf16.mxu0 0
        %548 = vmatpush1.bf16.msra.mxu0 0
        %549 = vmatprep.subr.bf16.mxu0 0
        %550 = vmatpush1.bf16.msra.mxu0 0
        %551 = vmatprep.subr.bf16.mxu0 0
        %552 = vmatpush1.bf16.msra.mxu0 0
        %553 = vmatprep.subr.bf16.mxu0 0
        %554 = vmatpush1.bf16.msra.mxu0 0
        %555 = vmatprep.mubr.bf16.mxu0 0
        %556 = vmatmul.mubr.bf16.gmra.mrb[0].mxu0 %v521
        %v557 = vpop.f32.mrb[0].mxu0
        %v558 = vadd.f32 %v506, %v557
        %v559 = vpop.f32.mrb[0].mxu0
        %v560 = vpop.f32.mrb[0].mxu0
        %v561 = vpop.f32.mrb[0].mxu0
        %562 = vdwg.mxu0
        %v563 = vmul.f32 %v558, 0.25
        %565 = vrot.lane.b32.xlu0 %v563, 112
        %v566 = vpop.permute.xlu0 %565
        %v568 = vpack.c.bf16 %v563, %v563
        %v569 = vpack.c.bf16 %v566, %v566
        %571 = vrot.lane.b32.xlu0 %v558, 112
        %v572 = vpop.permute.xlu0 %571
        %v574 = vpack.c.bf16 %v558, %v558
        %v575 = vpack.c.bf16 %v572, %v572
        %v576 = vld [vmem:[%s1] sm:$0xff]
        %578 = vrot.lane.b32.xlu0 %v574, 96
        %v579 = vpop.permute.xlu0 %578
        %vm580 = vcmask 130048
        %v582 = vsel %vm580, %v568, 0
        %v585 = vsel %vm580, %v579, 0
        %587 = vmatprep.subr.bf16.mxu0 0
        %588 = vmatpush1.bf16.xpose.msra.mxu0 %v585
        %589 = vmatprep.subr.bf16.mxu0 0
        %590 = vmatpush1.bf16.xpose.msra.mxu0 0
        %591 = vmatprep.subr.bf16.mxu0 0
        %592 = vmatpush1.bf16.xpose.msra.mxu0 0
        %593 = vmatprep.subr.bf16.mxu0 0
        %594 = vmatpush1.bf16.xpose.msra.mxu0 0
        %595 = vmatprep.subr.bf16.mxu0 0
        %596 = vmatpush1.bf16.xpose.msra.mxu0 0
        %597 = vmatprep.subr.bf16.mxu0 0
        %598 = vmatpush1.bf16.xpose.msra.mxu0 0
        %599 = vmatprep.subr.bf16.mxu0 0
        %600 = vmatpush1.bf16.xpose.msra.mxu0 0
        %601 = vmatprep.subr.bf16.mxu0 0
        %602 = vmatpush1.bf16.xpose.msra.mxu0 0
        %603 = vmatprep.subr.bf16.mxu0 0
        %604 = vmatpush1.bf16.xpose.msra.mxu0 0
        %605 = vmatprep.subr.bf16.mxu0 0
        %606 = vmatpush1.bf16.xpose.msra.mxu0 0
        %607 = vmatprep.subr.bf16.mxu0 0
        %608 = vmatpush1.bf16.xpose.msra.mxu0 0
        %609 = vmatprep.subr.bf16.mxu0 0
        %610 = vmatpush1.bf16.xpose.msra.mxu0 0
        %611 = vmatprep.subr.bf16.mxu0 0
        %612 = vmatpush1.bf16.xpose.msra.mxu0 0
        %613 = vmatprep.subr.bf16.mxu0 0
        %614 = vmatpush1.bf16.xpose.msra.mxu0 0
        %615 = vmatprep.subr.bf16.mxu0 0
        %616 = vmatpush1.bf16.xpose.msra.mxu0 0
        %617 = vmatprep.subr.bf16.mxu0 0
        %618 = vmatpush1.bf16.xpose.msra.mxu0 0
        %619 = vmatprep.mubr.bf16.mxu0 0
        %620 = vmatmul.mubr.bf16.gmra.mrb[0].mxu0 %v582
        %v621 = vpop.f32.mrb[0].mxu0
        %v622 = vadd.f32 %v576, %v621
        %v623 = vpop.f32.mrb[0].mxu0
        %v624 = vpop.f32.mrb[0].mxu0
        %v625 = vpop.f32.mrb[0].mxu0
        %626 = vdwg.mxu0
        %628 = vrot.lane.b32.xlu0 %v575, 96
        %v629 = vpop.permute.xlu0 %628
        %v631 = vsel %vm580, %v569, 0
        %v634 = vsel %vm580, %v629, 0
        %636 = vmatprep.subr.bf16.mxu0 0
        %637 = vmatpush1.bf16.xpose.msra.mxu0 %v634
        %638 = vmatprep.subr.bf16.mxu0 0
        %639 = vmatpush1.bf16.xpose.msra.mxu0 0
        %640 = vmatprep.subr.bf16.mxu0 0
        %641 = vmatpush1.bf16.xpose.msra.mxu0 0
        %642 = vmatprep.subr.bf16.mxu0 0
        %643 = vmatpush1.bf16.xpose.msra.mxu0 0
        %644 = vmatprep.subr.bf16.mxu0 0
        %645 = vmatpush1.bf16.xpose.msra.mxu0 0
        %646 = vmatprep.subr.bf16.mxu0 0
        %647 = vmatpush1.bf16.xpose.msra.mxu0 0
        %648 = vmatprep.subr.bf16.mxu0 0
        %649 = vmatpush1.bf16.xpose.msra.mxu0 0
        %650 = vmatprep.subr.bf16.mxu0 0
        %651 = vmatpush1.bf16.xpose.msra.mxu0 0
        %652 = vmatprep.subr.bf16.mxu0 0
        %653 = vmatpush1.bf16.xpose.msra.mxu0 0
        %654 = vmatprep.subr.bf16.mxu0 0
        %655 = vmatpush1.bf16.xpose.msra.mxu0 0
        %656 = vmatprep.subr.bf16.mxu0 0
        %657 = vmatpush1.bf16.xpose.msra.mxu0 0
        %658 = vmatprep.subr.bf16.mxu0 0
        %659 = vmatpush1.bf16.xpose.msra.mxu0 0
        %660 = vmatprep.subr.bf16.mxu0 0
        %661 = vmatpush1.bf16.xpose.msra.mxu0 0
        %662 = vmatprep.subr.bf16.mxu0 0
        %663 = vmatpush1.bf16.xpose.msra.mxu0 0
        %664 = vmatprep.subr.bf16.mxu0 0
        %665 = vmatpush1.bf16.xpose.msra.mxu0 0
        %666 = vmatprep.subr.bf16.mxu0 0
        %667 = vmatpush1.bf16.xpose.msra.mxu0 0
        %668 = vmatprep.mubr.bf16.mxu0 0
        %669 = vmatmul.mubr.bf16.gmra.mrb[0].mxu0 %v631
        %v670 = vpop.f32.mrb[0].mxu0
        %v671 = vadd.f32 %v576, %v670
        %v672 = vpop.f32.mrb[0].mxu0
        %v673 = vpop.f32.mrb[0].mxu0
        %v674 = vpop.f32.mrb[0].mxu0
        %675 = vdwg.mxu0
        %vm676 = vcmask 64512
        %v677 = vsel %vm676, %v622, -inf
        %678 = vmax.xlane.f32.xlu0 %v677
        %v679 = vpop.xlane.xlu0 %678
        %v680 = vsel %vm676, %v671, -inf
        %681 = vmax.xlane.f32.xlu0 %v680
        %v682 = vpop.xlane.xlu0 %681
        %v683 = vsub.f32 %v622, %v679
        %v684 = vsub.f32 %v671, %v682
        %v685 = vmul.f32 %v683, 1.442695
        %v686 = vpow.pop %v685
        %v687 = vmul.f32 %v684, 1.442695
        %v688 = vpow.pop %v687
        %v689 = vsel %vm676, %v686, 0.0
        %690 = vadd.xlane.f32.xlu0 %v689
        %v691 = vpop.xlane.xlu0 %690
        %v692 = vsel %vm676, %v688, 0.0
        %693 = vadd.xlane.f32.xlu0 %v692
        %v694 = vpop.xlane.xlu0 %693
        %v695 = vrcp.pop %v691
        %v696 = vrcp.pop %v694
        %v697 = vmul.f32 %v686, %v695
        %v698 = vmul.f32 %v688, %v696
        %v699 = vpack.c.bf16 %v697, %v697
        %v700 = vpack.c.bf16 %v698, %v698
        %701 = vrot.lane.b32.xlu0 %v574, 64
        %v702 = vpop.permute.xlu0 %701
        %v704 = vsel %vm676, %v699, 0
        %vm706 = vcmask 1043456
        %v708 = vsel %vm706, %v702, 0
        %710 = vmatprep.subr.bf16.mxu0 0
        %711 = vmatpush1.bf16.msra.mxu0 %v708
        %712 = vmatprep.subr.bf16.mxu0 0
        %713 = vmatpush1.bf16.msra.mxu0 0
        %714 = vmatprep.subr.bf16.mxu0 0
        %715 = vmatpush1.bf16.msra.mxu0 0
        %716 = vmatprep.subr.bf16.mxu0 0
        %717 = vmatpush1.bf16.msra.mxu0 0
        %718 = vmatprep.subr.bf16.mxu0 0
        %719 = vmatpush1.bf16.msra.mxu0 0
        %720 = vmatprep.subr.bf16.mxu0 0
        %721 = vmatpush1.bf16.msra.mxu0 0
        %722 = vmatprep.subr.bf16.mxu0 0
        %723 = vmatpush1.bf16.msra.mxu0 0
        %724 = vmatprep.subr.bf16.mxu0 0
        %725 = vmatpush1.bf16.msra.mxu0 0
        %726 = vmatprep.subr.bf16.mxu0 0
        %727 = vmatpush1.bf16.msra.mxu0 0
        %728 = vmatprep.subr.bf16.mxu0 0
        %729 = vmatpush1.bf16.msra.mxu0 0
        %730 = vmatprep.subr.bf16.mxu0 0
        %731 = vmatpush1.bf16.msra.mxu0 0
        %732 = vmatprep.subr.bf16.mxu0 0
        %733 = vmatpush1.bf16.msra.mxu0 0
        %734 = vmatprep.subr.bf16.mxu0 0
        %735 = vmatpush1.bf16.msra.mxu0 0
        %736 = vmatprep.subr.bf16.mxu0 0
        %737 = vmatpush1.bf16.msra.mxu0 0
        %738 = vmatprep.subr.bf16.mxu0 0
        %739 = vmatpush1.bf16.msra.mxu0 0
        %740 = vmatprep.subr.bf16.mxu0 0
        %741 = vmatpush1.bf16.msra.mxu0 0
        %742 = vmatprep.mubr.bf16.mxu0 0
        %743 = vmatmul.mubr.bf16.gmra.mrb[0].mxu0 %v704
        %v744 = vpop.f32.mrb[0].mxu0
        %v745 = vadd.f32 0.0, %v744
        %v746 = vpop.f32.mrb[0].mxu0
        %v747 = vpop.f32.mrb[0].mxu0
        %v748 = vpop.f32.mrb[0].mxu0
        %749 = vdwg.mxu0
        %750 = vrot.lane.b32.xlu0 %v575, 64
        %v751 = vpop.permute.xlu0 %750
        %v753 = vsel %vm676, %v700, 0
        %v756 = vsel %vm706, %v751, 0
        %758 = vmatprep.subr.bf16.mxu0 0
        %759 = vmatpush1.bf16.msra.mxu0 %v756
        %760 = vmatprep.subr.bf16.mxu0 0
        %761 = vmatpush1.bf16.msra.mxu0 0
        %762 = vmatprep.subr.bf16.mxu0 0
        %763 = vmatpush1.bf16.msra.mxu0 0
        %764 = vmatprep.subr.bf16.mxu0 0
        %765 = vmatpush1.bf16.msra.mxu0 0
        %766 = vmatprep.subr.bf16.mxu0 0
        %767 = vmatpush1.bf16.msra.mxu0 0
        %768 = vmatprep.subr.bf16.mxu0 0
        %769 = vmatpush1.bf16.msra.mxu0 0
        %770 = vmatprep.subr.bf16.mxu0 0
        %771 = vmatpush1.bf16.msra.mxu0 0
        %772 = vmatprep.subr.bf16.mxu0 0
        %773 = vmatpush1.bf16.msra.mxu0 0
        %774 = vmatprep.subr.bf16.mxu0 0
        %775 = vmatpush1.bf16.msra.mxu0 0
        %776 = vmatprep.subr.bf16.mxu0 0
        %777 = vmatpush1.bf16.msra.mxu0 0
        %778 = vmatprep.subr.bf16.mxu0 0
        %779 = vmatpush1.bf16.msra.mxu0 0
        %780 = vmatprep.subr.bf16.mxu0 0
        %781 = vmatpush1.bf16.msra.mxu0 0
        %782 = vmatprep.subr.bf16.mxu0 0
        %783 = vmatpush1.bf16.msra.mxu0 0
        %784 = vmatprep.subr.bf16.mxu0 0
        %785 = vmatpush1.bf16.msra.mxu0 0
        %786 = vmatprep.subr.bf16.mxu0 0
        %787 = vmatpush1.bf16.msra.mxu0 0
        %788 = vmatprep.subr.bf16.mxu0 0
        %789 = vmatpush1.bf16.msra.mxu0 0
        %790 = vmatprep.mubr.bf16.mxu0 0
        %791 = vmatmul.mubr.bf16.gmra.mrb[0].mxu0 %v753
        %v792 = vpop.f32.mrb[0].mxu0
        %v793 = vadd.f32 0.0, %v792
        %v794 = vpop.f32.mrb[0].mxu0
        %v795 = vpop.f32.mrb[0].mxu0
        %v796 = vpop.f32.mrb[0].mxu0
        %797 = vdwg.mxu0
        %v798 = vpack.c.bf16 %v745, %v745
        %v799 = vpack.c.bf16 %v793, %v793
        %v800 = vld [vmem:[%s6] sm:$0xf]
        %v801 = vld [vmem:[%s6 + $0x4] sm:$0xf]
        %v802 = vld [vmem:[%s6 + $0x8] sm:$0xf]
        %v803 = vld [vmem:[%s6 + $0xc] sm:$0xf]
        %v806 = vunpack.c.l.b16 %v800
        %v807 = vunpack.c.l.b16 %v801
        %v808 = vpack.c.b16 %v807, %v806
        %v811 = vsel %vm580, %v798, 0
        %813 = vmatprep.subr.bf16.mxu0 0
        %814 = vmatpush1.bf16.msra.mxu0 %v808
        %815 = vmatprep.subr.bf16.mxu0 0
        %816 = vmatpush1.bf16.msra.mxu0 0
        %817 = vmatprep.subr.bf16.mxu0 0
        %818 = vmatpush1.bf16.msra.mxu0 0
        %819 = vmatprep.subr.bf16.mxu0 0
        %820 = vmatpush1.bf16.msra.mxu0 0
        %821 = vmatprep.subr.bf16.mxu0 0
        %822 = vmatpush1.bf16.msra.mxu0 0
        %823 = vmatprep.subr.bf16.mxu0 0
        %824 = vmatpush1.bf16.msra.mxu0 0
        %825 = vmatprep.subr.bf16.mxu0 0
        %826 = vmatpush1.bf16.msra.mxu0 0
        %827 = vmatprep.subr.bf16.mxu0 0
        %828 = vmatpush1.bf16.msra.mxu0 0
        %829 = vmatprep.subr.bf16.mxu0 0
        %830 = vmatpush1.bf16.msra.mxu0 0
        %831 = vmatprep.subr.bf16.mxu0 0
        %832 = vmatpush1.bf16.msra.mxu0 0
        %833 = vmatprep.subr.bf16.mxu0 0
        %834 = vmatpush1.bf16.msra.mxu0 0
        %835 = vmatprep.subr.bf16.mxu0 0
        %836 = vmatpush1.bf16.msra.mxu0 0
        %837 = vmatprep.subr.bf16.mxu0 0
        %838 = vmatpush1.bf16.msra.mxu0 0
        %839 = vmatprep.subr.bf16.mxu0 0
        %840 = vmatpush1.bf16.msra.mxu0 0
        %841 = vmatprep.subr.bf16.mxu0 0
        %842 = vmatpush1.bf16.msra.mxu0 0
        %843 = vmatprep.subr.bf16.mxu0 0
        %844 = vmatpush1.bf16.msra.mxu0 0
        %845 = vmatprep.mubr.bf16.mxu0 0
        %846 = vmatmul.mubr.bf16.gmra.mrb[0].mxu0 %v811
        %v847 = vpop.f32.mrb[0].mxu0
        %v848 = vadd.f32 0.0, %v847
        %v849 = vpop.f32.mrb[0].mxu0
        %v850 = vpop.f32.mrb[0].mxu0
        %v851 = vpop.f32.mrb[0].mxu0
        %852 = vdwg.mxu0
        %v855 = vunpack.c.l.b16 %v802
        %v856 = vunpack.c.l.b16 %v803
        %v857 = vpack.c.b16 %v856, %v855
        %v860 = vsel %vm580, %v799, 0
        %862 = vmatprep.subr.bf16.mxu0 0
        %863 = vmatpush1.bf16.msra.mxu0 %v857
        %864 = vmatprep.subr.bf16.mxu0 0
        %865 = vmatpush1.bf16.msra.mxu0 0
        %866 = vmatprep.subr.bf16.mxu0 0
        %867 = vmatpush1.bf16.msra.mxu0 0
        %868 = vmatprep.subr.bf16.mxu0 0
        %869 = vmatpush1.bf16.msra.mxu0 0
        %870 = vmatprep.subr.bf16.mxu0 0
        %871 = vmatpush1.bf16.msra.mxu0 0
        %872 = vmatprep.subr.bf16.mxu0 0
        %873 = vmatpush1.bf16.msra.mxu0 0
        %874 = vmatprep.subr.bf16.mxu0 0
        %875 = vmatpush1.bf16.msra.mxu0 0
        %876 = vmatprep.subr.bf16.mxu0 0
        %877 = vmatpush1.bf16.msra.mxu0 0
        %878 = vmatprep.subr.bf16.mxu0 0
        %879 = vmatpush1.bf16.msra.mxu0 0
        %880 = vmatprep.subr.bf16.mxu0 0
        %881 = vmatpush1.bf16.msra.mxu0 0
        %882 = vmatprep.subr.bf16.mxu0 0
        %883 = vmatpush1.bf16.msra.mxu0 0
        %884 = vmatprep.subr.bf16.mxu0 0
        %885 = vmatpush1.bf16.msra.mxu0 0
        %886 = vmatprep.subr.bf16.mxu0 0
        %887 = vmatpush1.bf16.msra.mxu0 0
        %888 = vmatprep.subr.bf16.mxu0 0
        %889 = vmatpush1.bf16.msra.mxu0 0
        %890 = vmatprep.subr.bf16.mxu0 0
        %891 = vmatpush1.bf16.msra.mxu0 0
        %892 = vmatprep.subr.bf16.mxu0 0
        %893 = vmatpush1.bf16.msra.mxu0 0
        %894 = vmatprep.mubr.bf16.mxu0 0
        %895 = vmatmul.mubr.bf16.gmra.mrb[0].mxu0 %v860
        %v896 = vpop.f32.mrb[0].mxu0
        %v897 = vadd.f32 0.0, %v896
        %v898 = vpop.f32.mrb[0].mxu0
        %v899 = vpop.f32.mrb[0].mxu0
        %v900 = vpop.f32.mrb[0].mxu0
        %901 = vdwg.mxu0
        %v902 = vsel %vm467, %v848, 0.0
        %v903 = vsel %vm467, %v897, 0.0
        %v904 = vadd.f32 %v902, %v903
        %v905 = vld [vmem:[%s7] sm:$0x1]
        %v907 = vlaneseq
        %v908 = vshrl.u32 %v907, 7
        %v909 = vsub.s32 0, %v908
        %v910 = vrot.slane %v905, %v909
        %v912 = vadd.f32 %v904, %v910
        %v913 = vadd.f32 %v912, %v464
        %v914 = vld [vmem:[%s8] sm:$0x1]
        %v915 = vld [vmem:[%s9] sm:$0x1]
        %v916 = vsel %vm467, %v913, 0.0
        %917 = vadd.xlane.f32.xlu0 %v916
        %v918 = vpop.xlane.xlu0 %917
        %v919 = vmul.f32 %v918, %v471
        %v920 = vsub.f32 %v913, %v919
        %v921 = vmul.f32 %v920, %v920
        %v922 = vsel %vm467, %v921, 0.0
        %923 = vadd.xlane.f32.xlu0 %v922
        %v924 = vpop.xlane.xlu0 %923
        %v925 = vmul.f32 %v924, %v471
        %v926 = vadd.f32 %v925, 1e-05
        %v927 = vrsqrt.pop %v926
        %v928 = vmul.f32 %v920, %v927
        %v930 = vlaneseq
        %v931 = vshrl.u32 %v930, 7
        %v932 = vsub.s32 0, %v931
        %v933 = vrot.slane %v914, %v932
        %v935 = vmul.f32 %v928, %v933
        %v937 = vlaneseq
        %v938 = vshrl.u32 %v937, 7
        %v939 = vsub.s32 0, %v938
        %v940 = vrot.slane %v915, %v939
        %v942 = vadd.f32 %v935, %v940
        %v943 = vpack.c.bf16 %v942, %v942
        %v944 = vld [vmem:[%s10] sm:$0xf]
        %v945 = vld [vmem:[%s10 + $0x4] sm:$0xf]
        %v946 = vld [vmem:[%s10 + $0x8] sm:$0xf]
        %v947 = vld [vmem:[%s10 + $0xc] sm:$0xf]
        %v948 = vld [vmem:[%s11] sm:$0x1]
        %v950 = vlaneseq
        %v951 = vshrl.u32 %v950, 7
        %v952 = vsub.s32 0, %v951
        %v953 = vrot.slane %v948, %v952
        %v959 = vunpack.c.l.b16 %v944
        %v960 = vunpack.c.l.b16 %v945
        %v961 = vunpack.c.l.b16 %v946
        %v962 = vunpack.c.l.b16 %v947
        %v963 = vpack.c.b16 %v960, %v959
        %v964 = vpack.c.b16 %v962, %v961
        %v968 = vsel %vm467, %v943, 0
        %970 = vmatprep.subr.bf16.mxu0 0
        %971 = vmatpush1.bf16.msra.mxu0 %v963
        %972 = vmatprep.subr.bf16.mxu0 0
        %973 = vmatpush1.bf16.msra.mxu0 %v964
        %974 = vmatprep.subr.bf16.mxu0 0
        %975 = vmatpush1.bf16.msra.mxu0 0
        %976 = vmatprep.subr.bf16.mxu0 0
        %977 = vmatpush1.bf16.msra.mxu0 0
        %978 = vmatprep.subr.bf16.mxu0 0
        %979 = vmatpush1.bf16.msra.mxu0 0
        %980 = vmatprep.subr.bf16.mxu0 0
        %981 = vmatpush1.bf16.msra.mxu0 0
        %982 = vmatprep.subr.bf16.mxu0 0
        %983 = vmatpush1.bf16.msra.mxu0 0
        %984 = vmatprep.subr.bf16.mxu0 0
        %985 = vmatpush1.bf16.msra.mxu0 0
        %986 = vmatprep.subr.bf16.mxu0 0
        %987 = vmatpush1.bf16.msra.mxu0 0
        %988 = vmatprep.subr.bf16.mxu0 0
        %989 = vmatpush1.bf16.msra.mxu0 0
        %990 = vmatprep.subr.bf16.mxu0 0
        %991 = vmatpush1.bf16.msra.mxu0 0
        %992 = vmatprep.subr.bf16.mxu0 0
        %993 = vmatpush1.bf16.msra.mxu0 0
        %994 = vmatprep.subr.bf16.mxu0 0
        %995 = vmatpush1.bf16.msra.mxu0 0
        %996 = vmatprep.subr.bf16.mxu0 0
        %997 = vmatpush1.bf16.msra.mxu0 0
        %998 = vmatprep.subr.bf16.mxu0 0
        %999 = vmatpush1.bf16.msra.mxu0 0
        %1000 = vmatprep.subr.bf16.mxu0 0
        %1001 = vmatpush1.bf16.msra.mxu0 0
        %1002 = vmatprep.mubr.bf16.mxu0 0
        %1003 = vmatmul.mubr.bf16.gmra.mrb[0].mxu0 %v968
        %v1004 = vpop.f32.mrb[0].mxu0
        %v1005 = vadd.f32 %v953, %v1004
        %v1006 = vpop.f32.mrb[0].mxu0
        %v1007 = vpop.f32.mrb[0].mxu0
        %v1008 = vpop.f32.mrb[0].mxu0
        %1009 = vdwg.mxu0
        %v1010 = vmul.f32 %v1005, 1.702
        %v1011 = vxor.u32 %v1010, 2147483648
        %v1012 = vmul.f32 %v1011, 1.442695
        %v1013 = vpow.pop %v1012
        %v1014 = vadd.f32 %v1013, 1.0
        %v1015 = vrcp.pop %v1014
        %v1016 = vmul.f32 1.0, %v1015
        %v1017 = vmul.f32 %v1005, %v1016
        %v1018 = vpack.c.bf16 %v1017, %v1017
        %v1019 = vld [vmem:[%s12] sm:$0xf]
        %v1020 = vld [vmem:[%s12 + $0x4] sm:$0xf]
        %v1021 = vld [vmem:[%s12 + $0x8] sm:$0xf]
        %v1022 = vld [vmem:[%s12 + $0xc] sm:$0xf]
        %v1023 = vld [vmem:[%s12 + $0x10] sm:$0xf]
        %v1024 = vld [vmem:[%s12 + $0x14] sm:$0xf]
        %v1025 = vld [vmem:[%s12 + $0x18] sm:$0xf]
        %v1026 = vld [vmem:[%s12 + $0x1c] sm:$0xf]
        %v1027 = vld [vmem:[%s12 + $0x20] sm:$0xf]
        %v1028 = vld [vmem:[%s12 + $0x24] sm:$0xf]
        %v1029 = vld [vmem:[%s12 + $0x28] sm:$0xf]
        %v1030 = vld [vmem:[%s12 + $0x2c] sm:$0xf]
        %v1031 = vld [vmem:[%s12 + $0x30] sm:$0xf]
        %v1032 = vld [vmem:[%s12 + $0x34] sm:$0xf]
        %v1033 = vld [vmem:[%s12 + $0x38] sm:$0xf]
        %v1034 = vld [vmem:[%s12 + $0x3c] sm:$0xf]
        %v1035 = vld [vmem:[%s13] sm:$0x1]
        %v1037 = vlaneseq
        %v1038 = vshrl.u32 %v1037, 7
        %v1039 = vsub.s32 0, %v1038
        %v1040 = vrot.slane %v1035, %v1039
        %v1058 = vunpack.c.l.b16 %v1019
        %v1059 = vunpack.c.l.b16 %v1020
        %v1060 = vunpack.c.l.b16 %v1021
        %v1061 = vunpack.c.l.b16 %v1022
        %v1062 = vunpack.c.l.b16 %v1023
        %v1063 = vunpack.c.l.b16 %v1024
        %v1064 = vunpack.c.l.b16 %v1025
        %v1065 = vunpack.c.l.b16 %v1026
        %v1066 = vunpack.c.l.b16 %v1027
        %v1067 = vunpack.c.l.b16 %v1028
        %v1068 = vunpack.c.l.b16 %v1029
        %v1069 = vunpack.c.l.b16 %v1030
        %v1070 = vunpack.c.l.b16 %v1031
        %v1071 = vunpack.c.l.b16 %v1032
        %v1072 = vunpack.c.l.b16 %v1033
        %v1073 = vunpack.c.l.b16 %v1034
        %v1074 = vpack.c.b16 %v1059, %v1058
        %v1075 = vpack.c.b16 %v1061, %v1060
        %v1076 = vpack.c.b16 %v1063, %v1062
        %v1077 = vpack.c.b16 %v1065, %v1064
        %v1078 = vpack.c.b16 %v1067, %v1066
        %v1079 = vpack.c.b16 %v1069, %v1068
        %v1080 = vpack.c.b16 %v1071, %v1070
        %v1081 = vpack.c.b16 %v1073, %v1072
        %1090 = vmatprep.subr.bf16.mxu0 0
        %1091 = vmatpush1.bf16.msra.mxu0 %v1074
        %1092 = vmatprep.subr.bf16.mxu0 0
        %1093 = vmatpush1.bf16.msra.mxu0 %v1075
        %1094 = vmatprep.subr.bf16.mxu0 0
        %1095 = vmatpush1.bf16.msra.mxu0 %v1076
        %1096 = vmatprep.subr.bf16.mxu0 0
        %1097 = vmatpush1.bf16.msra.mxu0 %v1077
        %1098 = vmatprep.subr.bf16.mxu0 0
        %1099 = vmatpush1.bf16.msra.mxu0 %v1078
        %1100 = vmatprep.subr.bf16.mxu0 0
        %1101 = vmatpush1.bf16.msra.mxu0 %v1079
        %1102 = vmatprep.subr.bf16.mxu0 0
        %1103 = vmatpush1.bf16.msra.mxu0 %v1080
        %1104 = vmatprep.subr.bf16.mxu0 0
        %1105 = vmatpush1.bf16.msra.mxu0 %v1081
        %1106 = vmatprep.subr.bf16.mxu0 0
        %1107 = vmatpush1.bf16.msra.mxu0 0
        %1108 = vmatprep.subr.bf16.mxu0 0
        %1109 = vmatpush1.bf16.msra.mxu0 0
        %1110 = vmatprep.subr.bf16.mxu0 0
        %1111 = vmatpush1.bf16.msra.mxu0 0
        %1112 = vmatprep.subr.bf16.mxu0 0
        %1113 = vmatpush1.bf16.msra.mxu0 0
        %1114 = vmatprep.subr.bf16.mxu0 0
        %1115 = vmatpush1.bf16.msra.mxu0 0
        %1116 = vmatprep.subr.bf16.mxu0 0
        %1117 = vmatpush1.bf16.msra.mxu0 0
        %1118 = vmatprep.subr.bf16.mxu0 0
        %1119 = vmatpush1.bf16.msra.mxu0 0
        %1120 = vmatprep.subr.bf16.mxu0 0
        %1121 = vmatpush1.bf16.msra.mxu0 0
        %1122 = vmatprep.mubr.bf16.mxu0 0
        %1123 = vmatmul.mubr.bf16.gmra.mrb[0].mxu0 %v1018
        %v1124 = vpop.f32.mrb[0].mxu0
        %v1125 = vadd.f32 %v1040, %v1124
        %v1126 = vpop.f32.mrb[0].mxu0
        %v1127 = vpop.f32.mrb[0].mxu0
        %v1128 = vpop.f32.mrb[0].mxu0
        %1129 = vdwg.mxu0
        %v1130 = vadd.f32 %v1125, %v913
        %1131 = vst.msk [vmem:[%s458] sm:$0xff] %vm467, %v1130
        %s1132 = sand.u32 %s335, 1
        %s1133 = scalar_lea.sflag [#allocation3], %s1132
        %s1134 = sand.u32 %s335, 1
        %s1135 = smul.addr %s1134, 8
        %s1136 = scalar_lea.vmem [#allocation2], %s1135
        // Predicated region
        $region77: #{tpu_custom_call.1} parent=75 // pred_check
          %p1137 = pneg %p345
        $region78: #{tpu_custom_call.1} parent=75 // pred_check_branch
          %1139 = sbr.rel (%p1137) target = $region80
        $region79: #{tpu_custom_call.1} parent=75 // pred_region
          %s1141 = ssub.s32 128, 128
          %1142 = vsyncadd %s1133, %s1141
          %s1143 = smul.addr %s28, 128
          %s1144 = scalar_lea.hbm %s14, %s1143
          %s1146 = sshll.u32 %s1136, 4
          %s1147 = int_to_ptr.vmem [resolvable:$true] %s1146
          %1149 = dma.vmem_to_hbm [thread:$0]  %s1147, 128, %s1144, %s1133
        $region80: #{tpu_custom_call.1} parent=75 // pred_fallthru
          _
      $region76: #{tpu_custom_call.1} parent=5 // pred_fallthru
        _
      %p1150 = scmp.le.s32.totalorder 2, %s23
      // Predicated region
      $region81: #{tpu_custom_call.1} parent=5 // pred_check
        %p1151 = pneg %p1150
      $region82: #{tpu_custom_call.1} parent=5 // pred_check_branch
        %1153 = sbr.rel (%p1151) target = $region84
      $region83: #{tpu_custom_call.1} parent=5 // pred_region
        %s1154 = ssub.s32 %s23, 2
        // Predicated region
        $region85: #{tpu_custom_call.1} parent=83 // pred_check
          %p1155 = pneg %p351
        $region86: #{tpu_custom_call.1} parent=83 // pred_check_branch
          %1157 = sbr.rel (%p1155) target = $region88
        $region87: #{tpu_custom_call.1} parent=83 // pred_region
          %s1158 = sand.u32 %s336, 1
          %s1159 = scalar_lea.sflag [#allocation3], %s1158
          %s1160 = sand.u32 %s336, 1
          %s1161 = smul.addr %s1160, 8
          %s1162 = scalar_lea.vmem [#allocation2], %s1161
          %1163 = dma.done %s1159, 128
        $region88: #{tpu_custom_call.1} parent=83 // pred_fallthru
          _
      $region84: #{tpu_custom_call.1} parent=5 // pred_fallthru
        _
    $region6: #{tpu_custom_call.1} parent=1 // loop_footer
      %s27 = sadd.s32 1, %s23
    $region7: #{tpu_custom_call.1} parent=1 // loop_footer_branch
      %22 = sbr.rel target = $region3
    $region8: #{tpu_custom_call.1} parent=1 // loop_exit
      _
    %1164 = vsyncpa [#allocation3], 1
    %s1165 = scalar_lea.sflag [#allocation3], 1
    %1166 = vsyncpa %s1165, 1

</llo_original>
